<compile_context>
chip_gen: v5e
topology: v5e:2x2
jax: 0.10.0
libtpu: 0.0.40
codegen_flags: <defaults>
</compile_context>

<pallas_src>
import functools

import jax
import jax.numpy as jnp
from jax.experimental import pallas as pl
from jax.experimental.pallas import tpu as pltpu


def _layernorm(x, gamma, beta, eps):
    # torch-style LayerNorm from the reference: unbiased std, (std + eps) denom.
    d = x.shape[-1]
    mean = jnp.mean(x, axis=-1, keepdims=True)
    xc = x - mean
    var = jnp.sum(xc * xc, axis=-1, keepdims=True) * (1.0 / (d - 1))
    inv = pl.reciprocal(jnp.sqrt(var) + eps, approx=False)
    return gamma * xc * inv + beta


def encoder_stack_kernel(x_ref, pe_ref,
                         wq_ref, wk_ref, wv_ref, wo_ref,
                         g1_ref, be1_ref, w1_ref, b1_ref, w2_ref, b2_ref,
                         g2_ref, be2_ref,
                         *rest, n_layers, n_heads, B, T, eps, has_mask):
    if has_mask:
        m_ref, o_ref = rest
    else:
        (o_ref,) = rest

    BT, D = x_ref.shape                           # BT = B*T (batch folded into rows)
    H = n_heads
    dh = D // H
    inv_scale = 1.0 / (float(D) ** 0.5)           # reference scales by sqrt(d_model)

    x = x_ref[...].astype(jnp.float32) + pe_ref[...]
    if has_mask:
        mask = m_ref[...]
        x = x * mask

    def split_heads(z):
        # (BT, D) -> (H*B, T, dh): static lane slices + layout-preserving
        # leading-dim reshape (sublane blocks stay in multiples of 8).
        zh = jnp.stack([z[:, h * dh:(h + 1) * dh] for h in range(H)], axis=0)  # (H, BT, dh)
        return zh.reshape(H * B, T, dh)

    for l in range(n_layers):                     # static unroll (n_layers small)
        # ---- full-width projections, batch folded in: one MXU push each ----
        q = jnp.dot(x, wq_ref[l], preferred_element_type=jnp.float32) * inv_scale
        k = jnp.dot(x, wk_ref[l], preferred_element_type=jnp.float32)
        v = jnp.dot(x, wv_ref[l], preferred_element_type=jnp.float32)   # (BT, D)

        # ---- head axis only for the attention contractions ----
        qh, kh, vh = split_heads(q), split_heads(k), split_heads(v)     # (H*B, T, dh)

        s = jnp.einsum('gqe,gke->gqk', qh, kh,
                       preferred_element_type=jnp.float32)              # (H*B, T, T)
        s = s - jnp.max(s, axis=-1, keepdims=True)
        e = jnp.exp(s)
        p = e * pl.reciprocal(jnp.sum(e, axis=-1, keepdims=True), approx=True)
        ah = jnp.einsum('gqk,gke->gqe', p, vh,
                        preferred_element_type=jnp.float32)             # (H*B, T, dh)

        # ---- output projection; head-sum fused as one batched einsum + reduce
        #      (== concat(heads) @ Wo) ----
        ahh = ah.reshape(H, BT, dh)                                      # layout-preserving
        proj = jnp.einsum('hne,hef->hnf', ahh, wo_ref[l],
                          preferred_element_type=jnp.float32)            # (H, BT, D)
        attn = jnp.sum(proj, axis=0)                                     # (BT, D)

        # ---- residual + layernorm (attention block) ----
        y = _layernorm(x + attn, g1_ref[l], be1_ref[l], eps)

        # ---- feed forward + residual + layernorm ----
        hdn = jnp.dot(y, w1_ref[l], preferred_element_type=jnp.float32) + b1_ref[l]
        hdn = jnp.maximum(hdn, 0.0)
        ff = jnp.dot(hdn, w2_ref[l], preferred_element_type=jnp.float32) + b2_ref[l]
        x = _layernorm(y + ff, g2_ref[l], be2_ref[l], eps)
        if has_mask:
            x = x * mask

        o_ref[l] = x.astype(o_ref.dtype)


def positional_encodings(T, D, dtype=jnp.float32):
    # Same formula as positional_encodings_like for a (B, T, D) input.
    positions = jnp.arange(T, dtype=jnp.float32)[:, None]               # (T, 1)
    channels = jnp.arange(D)
    ch_even = jnp.where(channels % 2 == 0, channels, channels - 1).astype(jnp.float32)
    arg = positions / (10000.0 ** (ch_even / D))[None, :]               # (T, D)
    enc = jnp.where((channels % 2 == 0)[None, :], jnp.sin(arg), jnp.cos(arg))
    return enc.astype(dtype)


def encoder_forward(x, layer_params, n_heads, mask=None, eps=1e-6):
    """Fused encoder stack: one pallas_call, single program. Returns list of per-layer outputs."""
    B, T, D = x.shape
    L = len(layer_params)
    dh = D // n_heads

    st = lambda name: jnp.stack([p[name] for p in layer_params]).astype(jnp.float32)
    wq, wk, wv = st("wq"), st("wk"), st("wv")                            # (L, D, D) full width
    wo = st("wo").reshape(L, n_heads, dh, D)                             # (L, H, dh, D) head-split
    g1, be1 = st("ln1_g"), st("ln1_b")                                   # (L, 1, D)
    w1, b1 = st("w1"), st("b1")                                          # (L, D, Hff), (L, 1, Hff)
    w2, b2 = st("w2"), st("b2")                                          # (L, Hff, D), (L, 1, D)
    g2, be2 = st("ln2_g"), st("ln2_b")

    pe = positional_encodings(T, D, jnp.float32)                         # (T, D)
    pef = jnp.broadcast_to(pe[None], (B, T, D)).reshape(B * T, D)        # (BT, D)
    xf = x.reshape(B * T, D)

    has_mask = mask is not None
    args = [xf, pef, wq, wk, wv, wo, g1, be1, w1, b1, w2, b2, g2, be2]
    if has_mask:
        mf = jnp.broadcast_to(mask, (B, T, D)).astype(jnp.float32).reshape(B * T, D)
        args.append(mf)                                                  # only built when needed

    kernel = functools.partial(encoder_stack_kernel,
                               n_layers=L, n_heads=n_heads, B=B, T=T,
                               eps=eps, has_mask=has_mask)
    out = pl.pallas_call(
        kernel,
        out_shape=jax.ShapeDtypeStruct((L, B * T, D), x.dtype),
        compiler_params=pltpu.CompilerParams(vmem_limit_bytes=32 * 1024 * 1024),
    )(*args)
    out = out.reshape(L, B, T, D)
    return [out[l] for l in range(L)]


def init_layer_params(key, d_model, d_hidden):
    ks = jax.random.split(key, 6)
    s = 0.05
    return {
        # Linear weights stored pre-transposed as (in_features, out_features).
        "wq": s * jax.random.normal(ks[0], (d_model, d_model), jnp.float32),
        "wk": s * jax.random.normal(ks[1], (d_model, d_model), jnp.float32),
        "wv": s * jax.random.normal(ks[2], (d_model, d_model), jnp.float32),
        "wo": s * jax.random.normal(ks[3], (d_model, d_model), jnp.float32),
        "ln1_g": jnp.ones((1, d_model), jnp.float32),
        "ln1_b": jnp.zeros((1, d_model), jnp.float32),
        "w1": s * jax.random.normal(ks[4], (d_model, d_hidden), jnp.float32),
        "b1": jnp.zeros((1, d_hidden), jnp.float32),
        "w2": s * jax.random.normal(ks[5], (d_hidden, d_model), jnp.float32),
        "b2": jnp.zeros((1, d_model), jnp.float32),
        "ln2_g": jnp.ones((1, d_model), jnp.float32),
        "ln2_b": jnp.zeros((1, d_model), jnp.float32),
    }


def _encoder_reference(x, layer_params, n_heads, mask=None, eps=1e-6):
    # Pure-JAX replica of the PyTorch Encoder forward (eval mode), f32 matmuls.
    B, T, D = x.shape
    dh = D // n_heads
    scale = float(D) ** 0.5

    def ln(v, g, b):
        mean = v.mean(-1, keepdims=True)
        var = ((v - mean) ** 2).sum(-1, keepdims=True) / (D - 1)
        return g * (v - mean) / (jnp.sqrt(var) + eps) + b

    with jax.default_matmul_precision("float32"):
        x = x + positional_encodings(T, D, x.dtype)[None]
        if mask is not None:
            x = x * mask
        outs = []
        for p in layer_params:
            q, k, v = x @ p["wq"], x @ p["wk"], x @ p["wv"]
            heads = []
            for h in range(n_heads):
                sl = slice(h * dh, (h + 1) * dh)
                s = (q[..., sl] @ jnp.swapaxes(k[..., sl], 1, 2)) / scale
                heads.append(jax.nn.softmax(s, axis=-1) @ v[..., sl])
            attn = jnp.concatenate(heads, -1) @ p["wo"]
            y = ln(x + attn, p["ln1_g"], p["ln1_b"])
            ff = jnp.maximum(y @ p["w1"] + p["b1"], 0.0) @ p["w2"] + p["b2"]
            x = ln(y + ff, p["ln2_g"], p["ln2_b"])
            if mask is not None:
                x = x * mask
            outs.append(x)
    return outs


if __name__ == "__main__":
    d_model, d_hidden, n_layers, n_heads, drop_ratio = 32, 64, 2, 4, 0.1  # dropout unused (eval)
    B, T = 2, 8

    key = jax.random.PRNGKey(0)
    k_x, k_m, *k_layers = jax.random.split(key, n_layers + 2)
    x = jax.random.normal(k_x, (B, T, d_model), jnp.float32)
    layer_params = [init_layer_params(k, d_model, d_hidden) for k in k_layers]

    # ---- no-mask path (statically specialized: no mask tensor built or DMA'd) ----
    encoding = jax.block_until_ready(encoder_forward(x, layer_params, n_heads))
    assert len(encoding) == n_layers
    assert all(e.shape == (B, T, d_model) for e in encoding)
    ref = _encoder_reference(x, layer_params, n_heads)
    for got, want in zip(encoding, ref):
        err = float(jnp.max(jnp.abs(got - want)))
        assert err < 2e-3, f"max abs err {err}"

    # ---- masked path ----
    m = (jax.random.uniform(k_m, (B, T, 1)) > 0.25).astype(jnp.float32)
    encoding_m = jax.block_until_ready(encoder_forward(x, layer_params, n_heads, mask=m))
    ref_m = _encoder_reference(x, layer_params, n_heads, mask=m)
    for got, want in zip(encoding_m, ref_m):
        err = float(jnp.max(jnp.abs(got - want)))
        assert err < 2e-3, f"max abs err (mask) {err}"

    print("KERNEL_OK")
</pallas_src>

<mosaic_0001>
module attributes {stable_mosaic.version = 11 : i64} {
  func.func @encoder_stack_kernel(%arg0: memref<16x32xf32, #tpu.memory_space<vmem>>, %arg1: memref<16x32xf32, #tpu.memory_space<vmem>>, %arg2: memref<2x32x32xf32, #tpu.memory_space<vmem>>, %arg3: memref<2x32x32xf32, #tpu.memory_space<vmem>>, %arg4: memref<2x32x32xf32, #tpu.memory_space<vmem>>, %arg5: memref<2x4x8x32xf32, #tpu.memory_space<vmem>>, %arg6: memref<2x1x32xf32, #tpu.memory_space<vmem>>, %arg7: memref<2x1x32xf32, #tpu.memory_space<vmem>>, %arg8: memref<2x32x64xf32, #tpu.memory_space<vmem>>, %arg9: memref<2x1x64xf32, #tpu.memory_space<vmem>>, %arg10: memref<2x64x32xf32, #tpu.memory_space<vmem>>, %arg11: memref<2x1x32xf32, #tpu.memory_space<vmem>>, %arg12: memref<2x1x32xf32, #tpu.memory_space<vmem>>, %arg13: memref<2x1x32xf32, #tpu.memory_space<vmem>>, %arg14: memref<2x16x32xf32, #tpu.memory_space<vmem>>) attributes {dimension_semantics = [], scalar_prefetch = 0 : i64, scratch_operands = 0 : i64, tpu.core_type = #tpu.core_type<tc>} {
    %c0 = arith.constant 0 : index
    %c0_0 = arith.constant 0 : index
    %0 = vector.load %arg0[%c0, %c0_0] : memref<16x32xf32, #tpu.memory_space<vmem>>, vector<16x32xf32>
    %c0_1 = arith.constant 0 : index
    %c0_2 = arith.constant 0 : index
    %1 = vector.load %arg1[%c0_1, %c0_2] : memref<16x32xf32, #tpu.memory_space<vmem>>, vector<16x32xf32>
    %2 = arith.addf %0, %1 : vector<16x32xf32>
    %c0_3 = arith.constant 0 : index
    %c0_4 = arith.constant 0 : index
    %c0_5 = arith.constant 0 : index
    %3 = vector.load %arg2[%c0_3, %c0_4, %c0_5] : memref<2x32x32xf32, #tpu.memory_space<vmem>>, vector<1x32x32xf32>
    %4 = vector.shape_cast %3 : vector<1x32x32xf32> to vector<32x32xf32>
    %cst = arith.constant dense<0.000000e+00> : vector<16x32xf32>
    %5 = tpu.matmul %2, %4, %cst {dimension_numbers = #tpu.dot_dimension_numbers<[1], [0], [0], [1], [0, 0, 1, 1], [], []>} : vector<16x32xf32>, vector<32x32xf32>, vector<16x32xf32> -> vector<16x32xf32>
    %cst_6 = arith.constant 0.176776692 : f32
    %6 = vector.broadcast %cst_6 : f32 to vector<16x32xf32>
    %7 = arith.mulf %5, %6 : vector<16x32xf32>
    %c0_7 = arith.constant 0 : index
    %c0_8 = arith.constant 0 : index
    %c0_9 = arith.constant 0 : index
    %8 = vector.load %arg3[%c0_7, %c0_8, %c0_9] : memref<2x32x32xf32, #tpu.memory_space<vmem>>, vector<1x32x32xf32>
    %9 = vector.shape_cast %8 : vector<1x32x32xf32> to vector<32x32xf32>
    %cst_10 = arith.constant dense<0.000000e+00> : vector<16x32xf32>
    %10 = tpu.matmul %2, %9, %cst_10 {dimension_numbers = #tpu.dot_dimension_numbers<[1], [0], [0], [1], [0, 0, 1, 1], [], []>} : vector<16x32xf32>, vector<32x32xf32>, vector<16x32xf32> -> vector<16x32xf32>
    %c0_11 = arith.constant 0 : index
    %c0_12 = arith.constant 0 : index
    %c0_13 = arith.constant 0 : index
    %11 = vector.load %arg4[%c0_11, %c0_12, %c0_13] : memref<2x32x32xf32, #tpu.memory_space<vmem>>, vector<1x32x32xf32>
    %12 = vector.shape_cast %11 : vector<1x32x32xf32> to vector<32x32xf32>
    %cst_14 = arith.constant dense<0.000000e+00> : vector<16x32xf32>
    %13 = tpu.matmul %2, %12, %cst_14 {dimension_numbers = #tpu.dot_dimension_numbers<[1], [0], [0], [1], [0, 0, 1, 1], [], []>} : vector<16x32xf32>, vector<32x32xf32>, vector<16x32xf32> -> vector<16x32xf32>
    %14 = vector.extract_strided_slice %7 {offsets = [0, 0], sizes = [16, 8], strides = [1, 1]} : vector<16x32xf32> to vector<16x8xf32>
    %15 = vector.extract_strided_slice %7 {offsets = [0, 8], sizes = [16, 8], strides = [1, 1]} : vector<16x32xf32> to vector<16x8xf32>
    %16 = vector.extract_strided_slice %7 {offsets = [0, 16], sizes = [16, 8], strides = [1, 1]} : vector<16x32xf32> to vector<16x8xf32>
    %17 = vector.extract_strided_slice %7 {offsets = [0, 24], sizes = [16, 8], strides = [1, 1]} : vector<16x32xf32> to vector<16x8xf32>
    %18 = vector.shape_cast %14 : vector<16x8xf32> to vector<1x16x8xf32>
    %19 = vector.shape_cast %15 : vector<16x8xf32> to vector<1x16x8xf32>
    %20 = vector.shape_cast %16 : vector<16x8xf32> to vector<1x16x8xf32>
    %21 = vector.shape_cast %17 : vector<16x8xf32> to vector<1x16x8xf32>
    %22 = tpu.concatenate %18, %19, %20, %21 in 0 : vector<1x16x8xf32>, vector<1x16x8xf32>, vector<1x16x8xf32>, vector<1x16x8xf32> -> vector<4x16x8xf32>
    %23 = vector.shape_cast %22 : vector<4x16x8xf32> to vector<8x8x8xf32>
    %24 = vector.extract_strided_slice %10 {offsets = [0, 0], sizes = [16, 8], strides = [1, 1]} : vector<16x32xf32> to vector<16x8xf32>
    %25 = vector.extract_strided_slice %10 {offsets = [0, 8], sizes = [16, 8], strides = [1, 1]} : vector<16x32xf32> to vector<16x8xf32>
    %26 = vector.extract_strided_slice %10 {offsets = [0, 16], sizes = [16, 8], strides = [1, 1]} : vector<16x32xf32> to vector<16x8xf32>
    %27 = vector.extract_strided_slice %10 {offsets = [0, 24], sizes = [16, 8], strides = [1, 1]} : vector<16x32xf32> to vector<16x8xf32>
    %28 = vector.shape_cast %24 : vector<16x8xf32> to vector<1x16x8xf32>
    %29 = vector.shape_cast %25 : vector<16x8xf32> to vector<1x16x8xf32>
    %30 = vector.shape_cast %26 : vector<16x8xf32> to vector<1x16x8xf32>
    %31 = vector.shape_cast %27 : vector<16x8xf32> to vector<1x16x8xf32>
    %32 = tpu.concatenate %28, %29, %30, %31 in 0 : vector<1x16x8xf32>, vector<1x16x8xf32>, vector<1x16x8xf32>, vector<1x16x8xf32> -> vector<4x16x8xf32>
    %33 = vector.shape_cast %32 : vector<4x16x8xf32> to vector<8x8x8xf32>
    %34 = vector.extract_strided_slice %13 {offsets = [0, 0], sizes = [16, 8], strides = [1, 1]} : vector<16x32xf32> to vector<16x8xf32>
    %35 = vector.extract_strided_slice %13 {offsets = [0, 8], sizes = [16, 8], strides = [1, 1]} : vector<16x32xf32> to vector<16x8xf32>
    %36 = vector.extract_strided_slice %13 {offsets = [0, 16], sizes = [16, 8], strides = [1, 1]} : vector<16x32xf32> to vector<16x8xf32>
    %37 = vector.extract_strided_slice %13 {offsets = [0, 24], sizes = [16, 8], strides = [1, 1]} : vector<16x32xf32> to vector<16x8xf32>
    %38 = vector.shape_cast %34 : vector<16x8xf32> to vector<1x16x8xf32>
    %39 = vector.shape_cast %35 : vector<16x8xf32> to vector<1x16x8xf32>
    %40 = vector.shape_cast %36 : vector<16x8xf32> to vector<1x16x8xf32>
    %41 = vector.shape_cast %37 : vector<16x8xf32> to vector<1x16x8xf32>
    %42 = tpu.concatenate %38, %39, %40, %41 in 0 : vector<1x16x8xf32>, vector<1x16x8xf32>, vector<1x16x8xf32>, vector<1x16x8xf32> -> vector<4x16x8xf32>
    %43 = vector.shape_cast %42 : vector<4x16x8xf32> to vector<8x8x8xf32>
    "tpu.trace_start"() <{level = 10 : i32, message = "gqe,gke->gqk"}> : () -> ()
    %cst_15 = arith.constant dense<0.000000e+00> : vector<8x8x8xf32>
    %44 = tpu.matmul %23, %33, %cst_15 {dimension_numbers = #tpu.dot_dimension_numbers<[2], [2], [1], [1], [0, 0, 0, 1, 1, 1], [0], [0]>} : vector<8x8x8xf32>, vector<8x8x8xf32>, vector<8x8x8xf32> -> vector<8x8x8xf32>
    "tpu.trace_stop"() : () -> ()
    %cst_16 = arith.constant dense<0xFF800000> : vector<8x8xf32>
    %45 = vector.multi_reduction <maximumf>, %44, %cst_16 [2] : vector<8x8x8xf32> to vector<8x8xf32>
    %46 = vector.shape_cast %45 : vector<8x8xf32> to vector<8x8x1xf32>
    %47 = vector.broadcast %46 : vector<8x8x1xf32> to vector<8x8x8xf32>
    %48 = arith.subf %44, %47 : vector<8x8x8xf32>
    %49 = math.exp %48 : vector<8x8x8xf32>
    %cst_17 = arith.constant dense<0.000000e+00> : vector<8x8xf32>
    %50 = vector.multi_reduction <add>, %49, %cst_17 [2] : vector<8x8x8xf32> to vector<8x8xf32>
    %51 = vector.shape_cast %50 : vector<8x8xf32> to vector<8x8x1xf32>
    %52 = tpu.reciprocal %51 {approx = true} : vector<8x8x1xf32> -> vector<8x8x1xf32>
    %53 = vector.broadcast %52 : vector<8x8x1xf32> to vector<8x8x8xf32>
    %54 = arith.mulf %49, %53 : vector<8x8x8xf32>
    "tpu.trace_start"() <{level = 10 : i32, message = "gqk,gke->gqe"}> : () -> ()
    %cst_18 = arith.constant dense<0.000000e+00> : vector<8x8x8xf32>
    %55 = tpu.matmul %54, %43, %cst_18 {dimension_numbers = #tpu.dot_dimension_numbers<[2], [1], [1], [2], [0, 0, 0, 1, 1, 2], [0], [0]>} : vector<8x8x8xf32>, vector<8x8x8xf32>, vector<8x8x8xf32> -> vector<8x8x8xf32>
    "tpu.trace_stop"() : () -> ()
    %56 = vector.shape_cast %55 : vector<8x8x8xf32> to vector<4x16x8xf32>
    %c0_19 = arith.constant 0 : index
    %c0_20 = arith.constant 0 : index
    %c0_21 = arith.constant 0 : index
    %c0_22 = arith.constant 0 : index
    %57 = vector.load %arg5[%c0_19, %c0_20, %c0_21, %c0_22] : memref<2x4x8x32xf32, #tpu.memory_space<vmem>>, vector<1x4x8x32xf32>
    %58 = vector.shape_cast %57 : vector<1x4x8x32xf32> to vector<4x8x32xf32>
    "tpu.trace_start"() <{level = 10 : i32, message = "hne,hef->hnf"}> : () -> ()
    %cst_23 = arith.constant dense<0.000000e+00> : vector<4x16x32xf32>
    %59 = tpu.matmul %56, %58, %cst_23 {dimension_numbers = #tpu.dot_dimension_numbers<[2], [1], [1], [2], [0, 0, 0, 1, 1, 2], [0], [0]>} : vector<4x16x8xf32>, vector<4x8x32xf32>, vector<4x16x32xf32> -> vector<4x16x32xf32>
    "tpu.trace_stop"() : () -> ()
    %cst_24 = arith.constant dense<0.000000e+00> : vector<16x32xf32>
    %60 = vector.multi_reduction <add>, %59, %cst_24 [0] : vector<4x16x32xf32> to vector<16x32xf32>
    %61 = arith.addf %2, %60 : vector<16x32xf32>
    %c0_25 = arith.constant 0 : index
    %c0_26 = arith.constant 0 : index
    %c0_27 = arith.constant 0 : index
    %62 = vector.load %arg6[%c0_25, %c0_26, %c0_27] : memref<2x1x32xf32, #tpu.memory_space<vmem>>, vector<1x1x32xf32>
    %63 = vector.shape_cast %62 : vector<1x1x32xf32> to vector<1x32xf32>
    %c0_28 = arith.constant 0 : index
    %c0_29 = arith.constant 0 : index
    %c0_30 = arith.constant 0 : index
    %64 = vector.load %arg7[%c0_28, %c0_29, %c0_30] : memref<2x1x32xf32, #tpu.memory_space<vmem>>, vector<1x1x32xf32>
    %65 = vector.shape_cast %64 : vector<1x1x32xf32> to vector<1x32xf32>
    %cst_31 = arith.constant dense<0.000000e+00> : vector<16xf32>
    %66 = vector.multi_reduction <add>, %61, %cst_31 [1] : vector<16x32xf32> to vector<16xf32>
    %67 = vector.shape_cast %66 : vector<16xf32> to vector<16x1xf32>
    %cst_32 = arith.constant 3.200000e+01 : f32
    %68 = vector.broadcast %cst_32 : f32 to vector<16x1xf32>
    %69 = arith.divf %67, %68 : vector<16x1xf32>
    %70 = vector.broadcast %69 : vector<16x1xf32> to vector<16x32xf32>
    %71 = arith.subf %61, %70 : vector<16x32xf32>
    %72 = arith.mulf %71, %71 : vector<16x32xf32>
    %cst_33 = arith.constant dense<0.000000e+00> : vector<16xf32>
    %73 = vector.multi_reduction <add>, %72, %cst_33 [1] : vector<16x32xf32> to vector<16xf32>
    %74 = vector.shape_cast %73 : vector<16xf32> to vector<16x1xf32>
    %cst_34 = arith.constant 0.0322580636 : f32
    %75 = vector.broadcast %cst_34 : f32 to vector<16x1xf32>
    %76 = arith.mulf %74, %75 : vector<16x1xf32>
    %77 = math.sqrt %76 : vector<16x1xf32>
    %cst_35 = arith.constant 9.99999997E-7 : f32
    %78 = vector.broadcast %cst_35 : f32 to vector<16x1xf32>
    %79 = arith.addf %77, %78 : vector<16x1xf32>
    %80 = tpu.reciprocal %79 : vector<16x1xf32> -> vector<16x1xf32>
    %81 = vector.broadcast %63 : vector<1x32xf32> to vector<16x32xf32>
    %82 = arith.mulf %81, %71 : vector<16x32xf32>
    %83 = vector.broadcast %80 : vector<16x1xf32> to vector<16x32xf32>
    %84 = arith.mulf %82, %83 : vector<16x32xf32>
    %85 = vector.broadcast %65 : vector<1x32xf32> to vector<16x32xf32>
    %86 = arith.addf %84, %85 : vector<16x32xf32>
    %c0_36 = arith.constant 0 : index
    %c0_37 = arith.constant 0 : index
    %c0_38 = arith.constant 0 : index
    %87 = vector.load %arg8[%c0_36, %c0_37, %c0_38] : memref<2x32x64xf32, #tpu.memory_space<vmem>>, vector<1x32x64xf32>
    %88 = vector.shape_cast %87 : vector<1x32x64xf32> to vector<32x64xf32>
    %cst_39 = arith.constant dense<0.000000e+00> : vector<16x64xf32>
    %89 = tpu.matmul %86, %88, %cst_39 {dimension_numbers = #tpu.dot_dimension_numbers<[1], [0], [0], [1], [0, 0, 1, 1], [], []>} : vector<16x32xf32>, vector<32x64xf32>, vector<16x64xf32> -> vector<16x64xf32>
    %c0_40 = arith.constant 0 : index
    %c0_41 = arith.constant 0 : index
    %c0_42 = arith.constant 0 : index
    %90 = vector.load %arg9[%c0_40, %c0_41, %c0_42] : memref<2x1x64xf32, #tpu.memory_space<vmem>>, vector<1x1x64xf32>
    %91 = vector.shape_cast %90 : vector<1x1x64xf32> to vector<1x64xf32>
    %92 = vector.broadcast %91 : vector<1x64xf32> to vector<16x64xf32>
    %93 = arith.addf %89, %92 : vector<16x64xf32>
    %cst_43 = arith.constant 0.000000e+00 : f32
    %94 = vector.broadcast %cst_43 : f32 to vector<16x64xf32>
    %95 = arith.maximumf %93, %94 : vector<16x64xf32>
    %c0_44 = arith.constant 0 : index
    %c0_45 = arith.constant 0 : index
    %c0_46 = arith.constant 0 : index
    %96 = vector.load %arg10[%c0_44, %c0_45, %c0_46] : memref<2x64x32xf32, #tpu.memory_space<vmem>>, vector<1x64x32xf32>
    %97 = vector.shape_cast %96 : vector<1x64x32xf32> to vector<64x32xf32>
    %cst_47 = arith.constant dense<0.000000e+00> : vector<16x32xf32>
    %98 = tpu.matmul %95, %97, %cst_47 {dimension_numbers = #tpu.dot_dimension_numbers<[1], [0], [0], [1], [0, 0, 1, 1], [], []>} : vector<16x64xf32>, vector<64x32xf32>, vector<16x32xf32> -> vector<16x32xf32>
    %c0_48 = arith.constant 0 : index
    %c0_49 = arith.constant 0 : index
    %c0_50 = arith.constant 0 : index
    %99 = vector.load %arg11[%c0_48, %c0_49, %c0_50] : memref<2x1x32xf32, #tpu.memory_space<vmem>>, vector<1x1x32xf32>
    %100 = vector.shape_cast %99 : vector<1x1x32xf32> to vector<1x32xf32>
    %101 = vector.broadcast %100 : vector<1x32xf32> to vector<16x32xf32>
    %102 = arith.addf %98, %101 : vector<16x32xf32>
    %103 = arith.addf %86, %102 : vector<16x32xf32>
    %c0_51 = arith.constant 0 : index
    %c0_52 = arith.constant 0 : index
    %c0_53 = arith.constant 0 : index
    %104 = vector.load %arg12[%c0_51, %c0_52, %c0_53] : memref<2x1x32xf32, #tpu.memory_space<vmem>>, vector<1x1x32xf32>
    %105 = vector.shape_cast %104 : vector<1x1x32xf32> to vector<1x32xf32>
    %c0_54 = arith.constant 0 : index
    %c0_55 = arith.constant 0 : index
    %c0_56 = arith.constant 0 : index
    %106 = vector.load %arg13[%c0_54, %c0_55, %c0_56] : memref<2x1x32xf32, #tpu.memory_space<vmem>>, vector<1x1x32xf32>
    %107 = vector.shape_cast %106 : vector<1x1x32xf32> to vector<1x32xf32>
    %cst_57 = arith.constant dense<0.000000e+00> : vector<16xf32>
    %108 = vector.multi_reduction <add>, %103, %cst_57 [1] : vector<16x32xf32> to vector<16xf32>
    %109 = vector.shape_cast %108 : vector<16xf32> to vector<16x1xf32>
    %cst_58 = arith.constant 3.200000e+01 : f32
    %110 = vector.broadcast %cst_58 : f32 to vector<16x1xf32>
    %111 = arith.divf %109, %110 : vector<16x1xf32>
    %112 = vector.broadcast %111 : vector<16x1xf32> to vector<16x32xf32>
    %113 = arith.subf %103, %112 : vector<16x32xf32>
    %114 = arith.mulf %113, %113 : vector<16x32xf32>
    %cst_59 = arith.constant dense<0.000000e+00> : vector<16xf32>
    %115 = vector.multi_reduction <add>, %114, %cst_59 [1] : vector<16x32xf32> to vector<16xf32>
    %116 = vector.shape_cast %115 : vector<16xf32> to vector<16x1xf32>
    %cst_60 = arith.constant 0.0322580636 : f32
    %117 = vector.broadcast %cst_60 : f32 to vector<16x1xf32>
    %118 = arith.mulf %116, %117 : vector<16x1xf32>
    %119 = math.sqrt %118 : vector<16x1xf32>
    %cst_61 = arith.constant 9.99999997E-7 : f32
    %120 = vector.broadcast %cst_61 : f32 to vector<16x1xf32>
    %121 = arith.addf %119, %120 : vector<16x1xf32>
    %122 = tpu.reciprocal %121 : vector<16x1xf32> -> vector<16x1xf32>
    %123 = vector.broadcast %105 : vector<1x32xf32> to vector<16x32xf32>
    %124 = arith.mulf %123, %113 : vector<16x32xf32>
    %125 = vector.broadcast %122 : vector<16x1xf32> to vector<16x32xf32>
    %126 = arith.mulf %124, %125 : vector<16x32xf32>
    %127 = vector.broadcast %107 : vector<1x32xf32> to vector<16x32xf32>
    %128 = arith.addf %126, %127 : vector<16x32xf32>
    %c0_62 = arith.constant 0 : index
    %c0_63 = arith.constant 0 : index
    %c0_64 = arith.constant 0 : index
    %129 = vector.load %arg14[%c0_62, %c0_63, %c0_64] : memref<2x16x32xf32, #tpu.memory_space<vmem>>, vector<1x16x32xf32>
    %130 = vector.shape_cast %129 : vector<1x16x32xf32> to vector<16x32xf32>
    %131 = vector.shape_cast %128 : vector<16x32xf32> to vector<1x16x32xf32>
    tpu.vector_store %arg14[%c0_62, %c0_63, %c0_64], %131 {strides = array<i32>} : memref<2x16x32xf32, #tpu.memory_space<vmem>>, vector<1x16x32xf32>,
    %c1 = arith.constant 1 : index
    %c0_65 = arith.constant 0 : index
    %c0_66 = arith.constant 0 : index
    %132 = vector.load %arg2[%c1, %c0_65, %c0_66] : memref<2x32x32xf32, #tpu.memory_space<vmem>>, vector<1x32x32xf32>
    %133 = vector.shape_cast %132 : vector<1x32x32xf32> to vector<32x32xf32>
    %cst_67 = arith.constant dense<0.000000e+00> : vector<16x32xf32>
    %134 = tpu.matmul %128, %133, %cst_67 {dimension_numbers = #tpu.dot_dimension_numbers<[1], [0], [0], [1], [0, 0, 1, 1], [], []>} : vector<16x32xf32>, vector<32x32xf32>, vector<16x32xf32> -> vector<16x32xf32>
    %cst_68 = arith.constant 0.176776692 : f32
    %135 = vector.broadcast %cst_68 : f32 to vector<16x32xf32>
    %136 = arith.mulf %134, %135 : vector<16x32xf32>
    %c1_69 = arith.constant 1 : index
    %c0_70 = arith.constant 0 : index
    %c0_71 = arith.constant 0 : index
    %137 = vector.load %arg3[%c1_69, %c0_70, %c0_71] : memref<2x32x32xf32, #tpu.memory_space<vmem>>, vector<1x32x32xf32>
    %138 = vector.shape_cast %137 : vector<1x32x32xf32> to vector<32x32xf32>
    %cst_72 = arith.constant dense<0.000000e+00> : vector<16x32xf32>
    %139 = tpu.matmul %128, %138, %cst_72 {dimension_numbers = #tpu.dot_dimension_numbers<[1], [0], [0], [1], [0, 0, 1, 1], [], []>} : vector<16x32xf32>, vector<32x32xf32>, vector<16x32xf32> -> vector<16x32xf32>
    %c1_73 = arith.constant 1 : index
    %c0_74 = arith.constant 0 : index
    %c0_75 = arith.constant 0 : index
    %140 = vector.load %arg4[%c1_73, %c0_74, %c0_75] : memref<2x32x32xf32, #tpu.memory_space<vmem>>, vector<1x32x32xf32>
    %141 = vector.shape_cast %140 : vector<1x32x32xf32> to vector<32x32xf32>
    %cst_76 = arith.constant dense<0.000000e+00> : vector<16x32xf32>
    %142 = tpu.matmul %128, %141, %cst_76 {dimension_numbers = #tpu.dot_dimension_numbers<[1], [0], [0], [1], [0, 0, 1, 1], [], []>} : vector<16x32xf32>, vector<32x32xf32>, vector<16x32xf32> -> vector<16x32xf32>
    %143 = vector.extract_strided_slice %136 {offsets = [0, 0], sizes = [16, 8], strides = [1, 1]} : vector<16x32xf32> to vector<16x8xf32>
    %144 = vector.extract_strided_slice %136 {offsets = [0, 8], sizes = [16, 8], strides = [1, 1]} : vector<16x32xf32> to vector<16x8xf32>
    %145 = vector.extract_strided_slice %136 {offsets = [0, 16], sizes = [16, 8], strides = [1, 1]} : vector<16x32xf32> to vector<16x8xf32>
    %146 = vector.extract_strided_slice %136 {offsets = [0, 24], sizes = [16, 8], strides = [1, 1]} : vector<16x32xf32> to vector<16x8xf32>
    %147 = vector.shape_cast %143 : vector<16x8xf32> to vector<1x16x8xf32>
    %148 = vector.shape_cast %144 : vector<16x8xf32> to vector<1x16x8xf32>
    %149 = vector.shape_cast %145 : vector<16x8xf32> to vector<1x16x8xf32>
    %150 = vector.shape_cast %146 : vector<16x8xf32> to vector<1x16x8xf32>
    %151 = tpu.concatenate %147, %148, %149, %150 in 0 : vector<1x16x8xf32>, vector<1x16x8xf32>, vector<1x16x8xf32>, vector<1x16x8xf32> -> vector<4x16x8xf32>
    %152 = vector.shape_cast %151 : vector<4x16x8xf32> to vector<8x8x8xf32>
    %153 = vector.extract_strided_slice %139 {offsets = [0, 0], sizes = [16, 8], strides = [1, 1]} : vector<16x32xf32> to vector<16x8xf32>
    %154 = vector.extract_strided_slice %139 {offsets = [0, 8], sizes = [16, 8], strides = [1, 1]} : vector<16x32xf32> to vector<16x8xf32>
    %155 = vector.extract_strided_slice %139 {offsets = [0, 16], sizes = [16, 8], strides = [1, 1]} : vector<16x32xf32> to vector<16x8xf32>
    %156 = vector.extract_strided_slice %139 {offsets = [0, 24], sizes = [16, 8], strides = [1, 1]} : vector<16x32xf32> to vector<16x8xf32>
    %157 = vector.shape_cast %153 : vector<16x8xf32> to vector<1x16x8xf32>
    %158 = vector.shape_cast %154 : vector<16x8xf32> to vector<1x16x8xf32>
    %159 = vector.shape_cast %155 : vector<16x8xf32> to vector<1x16x8xf32>
    %160 = vector.shape_cast %156 : vector<16x8xf32> to vector<1x16x8xf32>
    %161 = tpu.concatenate %157, %158, %159, %160 in 0 : vector<1x16x8xf32>, vector<1x16x8xf32>, vector<1x16x8xf32>, vector<1x16x8xf32> -> vector<4x16x8xf32>
    %162 = vector.shape_cast %161 : vector<4x16x8xf32> to vector<8x8x8xf32>
    %163 = vector.extract_strided_slice %142 {offsets = [0, 0], sizes = [16, 8], strides = [1, 1]} : vector<16x32xf32> to vector<16x8xf32>
    %164 = vector.extract_strided_slice %142 {offsets = [0, 8], sizes = [16, 8], strides = [1, 1]} : vector<16x32xf32> to vector<16x8xf32>
    %165 = vector.extract_strided_slice %142 {offsets = [0, 16], sizes = [16, 8], strides = [1, 1]} : vector<16x32xf32> to vector<16x8xf32>
    %166 = vector.extract_strided_slice %142 {offsets = [0, 24], sizes = [16, 8], strides = [1, 1]} : vector<16x32xf32> to vector<16x8xf32>
    %167 = vector.shape_cast %163 : vector<16x8xf32> to vector<1x16x8xf32>
    %168 = vector.shape_cast %164 : vector<16x8xf32> to vector<1x16x8xf32>
    %169 = vector.shape_cast %165 : vector<16x8xf32> to vector<1x16x8xf32>
    %170 = vector.shape_cast %166 : vector<16x8xf32> to vector<1x16x8xf32>
    %171 = tpu.concatenate %167, %168, %169, %170 in 0 : vector<1x16x8xf32>, vector<1x16x8xf32>, vector<1x16x8xf32>, vector<1x16x8xf32> -> vector<4x16x8xf32>
    %172 = vector.shape_cast %171 : vector<4x16x8xf32> to vector<8x8x8xf32>
    "tpu.trace_start"() <{level = 10 : i32, message = "gqe,gke->gqk"}> : () -> ()
    %cst_77 = arith.constant dense<0.000000e+00> : vector<8x8x8xf32>
    %173 = tpu.matmul %152, %162, %cst_77 {dimension_numbers = #tpu.dot_dimension_numbers<[2], [2], [1], [1], [0, 0, 0, 1, 1, 1], [0], [0]>} : vector<8x8x8xf32>, vector<8x8x8xf32>, vector<8x8x8xf32> -> vector<8x8x8xf32>
    "tpu.trace_stop"() : () -> ()
    %cst_78 = arith.constant dense<0xFF800000> : vector<8x8xf32>
    %174 = vector.multi_reduction <maximumf>, %173, %cst_78 [2] : vector<8x8x8xf32> to vector<8x8xf32>
    %175 = vector.shape_cast %174 : vector<8x8xf32> to vector<8x8x1xf32>
    %176 = vector.broadcast %175 : vector<8x8x1xf32> to vector<8x8x8xf32>
    %177 = arith.subf %173, %176 : vector<8x8x8xf32>
    %178 = math.exp %177 : vector<8x8x8xf32>
    %cst_79 = arith.constant dense<0.000000e+00> : vector<8x8xf32>
    %179 = vector.multi_reduction <add>, %178, %cst_79 [2] : vector<8x8x8xf32> to vector<8x8xf32>
    %180 = vector.shape_cast %179 : vector<8x8xf32> to vector<8x8x1xf32>
    %181 = tpu.reciprocal %180 {approx = true} : vector<8x8x1xf32> -> vector<8x8x1xf32>
    %182 = vector.broadcast %181 : vector<8x8x1xf32> to vector<8x8x8xf32>
    %183 = arith.mulf %178, %182 : vector<8x8x8xf32>
    "tpu.trace_start"() <{level = 10 : i32, message = "gqk,gke->gqe"}> : () -> ()
    %cst_80 = arith.constant dense<0.000000e+00> : vector<8x8x8xf32>
    %184 = tpu.matmul %183, %172, %cst_80 {dimension_numbers = #tpu.dot_dimension_numbers<[2], [1], [1], [2], [0, 0, 0, 1, 1, 2], [0], [0]>} : vector<8x8x8xf32>, vector<8x8x8xf32>, vector<8x8x8xf32> -> vector<8x8x8xf32>
    "tpu.trace_stop"() : () -> ()
    %185 = vector.shape_cast %184 : vector<8x8x8xf32> to vector<4x16x8xf32>
    %c1_81 = arith.constant 1 : index
    %c0_82 = arith.constant 0 : index
    %c0_83 = arith.constant 0 : index
    %c0_84 = arith.constant 0 : index
    %186 = vector.load %arg5[%c1_81, %c0_82, %c0_83, %c0_84] : memref<2x4x8x32xf32, #tpu.memory_space<vmem>>, vector<1x4x8x32xf32>
    %187 = vector.shape_cast %186 : vector<1x4x8x32xf32> to vector<4x8x32xf32>
    "tpu.trace_start"() <{level = 10 : i32, message = "hne,hef->hnf"}> : () -> ()
    %cst_85 = arith.constant dense<0.000000e+00> : vector<4x16x32xf32>
    %188 = tpu.matmul %185, %187, %cst_85 {dimension_numbers = #tpu.dot_dimension_numbers<[2], [1], [1], [2], [0, 0, 0, 1, 1, 2], [0], [0]>} : vector<4x16x8xf32>, vector<4x8x32xf32>, vector<4x16x32xf32> -> vector<4x16x32xf32>
    "tpu.trace_stop"() : () -> ()
    %cst_86 = arith.constant dense<0.000000e+00> : vector<16x32xf32>
    %189 = vector.multi_reduction <add>, %188, %cst_86 [0] : vector<4x16x32xf32> to vector<16x32xf32>
    %190 = arith.addf %128, %189 : vector<16x32xf32>
    %c1_87 = arith.constant 1 : index
    %c0_88 = arith.constant 0 : index
    %c0_89 = arith.constant 0 : index
    %191 = vector.load %arg6[%c1_87, %c0_88, %c0_89] : memref<2x1x32xf32, #tpu.memory_space<vmem>>, vector<1x1x32xf32>
    %192 = vector.shape_cast %191 : vector<1x1x32xf32> to vector<1x32xf32>
    %c1_90 = arith.constant 1 : index
    %c0_91 = arith.constant 0 : index
    %c0_92 = arith.constant 0 : index
    %193 = vector.load %arg7[%c1_90, %c0_91, %c0_92] : memref<2x1x32xf32, #tpu.memory_space<vmem>>, vector<1x1x32xf32>
    %194 = vector.shape_cast %193 : vector<1x1x32xf32> to vector<1x32xf32>
    %cst_93 = arith.constant dense<0.000000e+00> : vector<16xf32>
    %195 = vector.multi_reduction <add>, %190, %cst_93 [1] : vector<16x32xf32> to vector<16xf32>
    %196 = vector.shape_cast %195 : vector<16xf32> to vector<16x1xf32>
    %cst_94 = arith.constant 3.200000e+01 : f32
    %197 = vector.broadcast %cst_94 : f32 to vector<16x1xf32>
    %198 = arith.divf %196, %197 : vector<16x1xf32>
    %199 = vector.broadcast %198 : vector<16x1xf32> to vector<16x32xf32>
    %200 = arith.subf %190, %199 : vector<16x32xf32>
    %201 = arith.mulf %200, %200 : vector<16x32xf32>
    %cst_95 = arith.constant dense<0.000000e+00> : vector<16xf32>
    %202 = vector.multi_reduction <add>, %201, %cst_95 [1] : vector<16x32xf32> to vector<16xf32>
    %203 = vector.shape_cast %202 : vector<16xf32> to vector<16x1xf32>
    %cst_96 = arith.constant 0.0322580636 : f32
    %204 = vector.broadcast %cst_96 : f32 to vector<16x1xf32>
    %205 = arith.mulf %203, %204 : vector<16x1xf32>
    %206 = math.sqrt %205 : vector<16x1xf32>
    %cst_97 = arith.constant 9.99999997E-7 : f32
    %207 = vector.broadcast %cst_97 : f32 to vector<16x1xf32>
    %208 = arith.addf %206, %207 : vector<16x1xf32>
    %209 = tpu.reciprocal %208 : vector<16x1xf32> -> vector<16x1xf32>
    %210 = vector.broadcast %192 : vector<1x32xf32> to vector<16x32xf32>
    %211 = arith.mulf %210, %200 : vector<16x32xf32>
    %212 = vector.broadcast %209 : vector<16x1xf32> to vector<16x32xf32>
    %213 = arith.mulf %211, %212 : vector<16x32xf32>
    %214 = vector.broadcast %194 : vector<1x32xf32> to vector<16x32xf32>
    %215 = arith.addf %213, %214 : vector<16x32xf32>
    %c1_98 = arith.constant 1 : index
    %c0_99 = arith.constant 0 : index
    %c0_100 = arith.constant 0 : index
    %216 = vector.load %arg8[%c1_98, %c0_99, %c0_100] : memref<2x32x64xf32, #tpu.memory_space<vmem>>, vector<1x32x64xf32>
    %217 = vector.shape_cast %216 : vector<1x32x64xf32> to vector<32x64xf32>
    %cst_101 = arith.constant dense<0.000000e+00> : vector<16x64xf32>
    %218 = tpu.matmul %215, %217, %cst_101 {dimension_numbers = #tpu.dot_dimension_numbers<[1], [0], [0], [1], [0, 0, 1, 1], [], []>} : vector<16x32xf32>, vector<32x64xf32>, vector<16x64xf32> -> vector<16x64xf32>
    %c1_102 = arith.constant 1 : index
    %c0_103 = arith.constant 0 : index
    %c0_104 = arith.constant 0 : index
    %219 = vector.load %arg9[%c1_102, %c0_103, %c0_104] : memref<2x1x64xf32, #tpu.memory_space<vmem>>, vector<1x1x64xf32>
    %220 = vector.shape_cast %219 : vector<1x1x64xf32> to vector<1x64xf32>
    %221 = vector.broadcast %220 : vector<1x64xf32> to vector<16x64xf32>
    %222 = arith.addf %218, %221 : vector<16x64xf32>
    %cst_105 = arith.constant 0.000000e+00 : f32
    %223 = vector.broadcast %cst_105 : f32 to vector<16x64xf32>
    %224 = arith.maximumf %222, %223 : vector<16x64xf32>
    %c1_106 = arith.constant 1 : index
    %c0_107 = arith.constant 0 : index
    %c0_108 = arith.constant 0 : index
    %225 = vector.load %arg10[%c1_106, %c0_107, %c0_108] : memref<2x64x32xf32, #tpu.memory_space<vmem>>, vector<1x64x32xf32>
    %226 = vector.shape_cast %225 : vector<1x64x32xf32> to vector<64x32xf32>
    %cst_109 = arith.constant dense<0.000000e+00> : vector<16x32xf32>
    %227 = tpu.matmul %224, %226, %cst_109 {dimension_numbers = #tpu.dot_dimension_numbers<[1], [0], [0], [1], [0, 0, 1, 1], [], []>} : vector<16x64xf32>, vector<64x32xf32>, vector<16x32xf32> -> vector<16x32xf32>
    %c1_110 = arith.constant 1 : index
    %c0_111 = arith.constant 0 : index
    %c0_112 = arith.constant 0 : index
    %228 = vector.load %arg11[%c1_110, %c0_111, %c0_112] : memref<2x1x32xf32, #tpu.memory_space<vmem>>, vector<1x1x32xf32>
    %229 = vector.shape_cast %228 : vector<1x1x32xf32> to vector<1x32xf32>
    %230 = vector.broadcast %229 : vector<1x32xf32> to vector<16x32xf32>
    %231 = arith.addf %227, %230 : vector<16x32xf32>
    %232 = arith.addf %215, %231 : vector<16x32xf32>
    %c1_113 = arith.constant 1 : index
    %c0_114 = arith.constant 0 : index
    %c0_115 = arith.constant 0 : index
    %233 = vector.load %arg12[%c1_113, %c0_114, %c0_115] : memref<2x1x32xf32, #tpu.memory_space<vmem>>, vector<1x1x32xf32>
    %234 = vector.shape_cast %233 : vector<1x1x32xf32> to vector<1x32xf32>
    %c1_116 = arith.constant 1 : index
    %c0_117 = arith.constant 0 : index
    %c0_118 = arith.constant 0 : index
    %235 = vector.load %arg13[%c1_116, %c0_117, %c0_118] : memref<2x1x32xf32, #tpu.memory_space<vmem>>, vector<1x1x32xf32>
    %236 = vector.shape_cast %235 : vector<1x1x32xf32> to vector<1x32xf32>
    %cst_119 = arith.constant dense<0.000000e+00> : vector<16xf32>
    %237 = vector.multi_reduction <add>, %232, %cst_119 [1] : vector<16x32xf32> to vector<16xf32>
    %238 = vector.shape_cast %237 : vector<16xf32> to vector<16x1xf32>
    %cst_120 = arith.constant 3.200000e+01 : f32
    %239 = vector.broadcast %cst_120 : f32 to vector<16x1xf32>
    %240 = arith.divf %238, %239 : vector<16x1xf32>
    %241 = vector.broadcast %240 : vector<16x1xf32> to vector<16x32xf32>
    %242 = arith.subf %232, %241 : vector<16x32xf32>
    %243 = arith.mulf %242, %242 : vector<16x32xf32>
    %cst_121 = arith.constant dense<0.000000e+00> : vector<16xf32>
    %244 = vector.multi_reduction <add>, %243, %cst_121 [1] : vector<16x32xf32> to vector<16xf32>
    %245 = vector.shape_cast %244 : vector<16xf32> to vector<16x1xf32>
    %cst_122 = arith.constant 0.0322580636 : f32
    %246 = vector.broadcast %cst_122 : f32 to vector<16x1xf32>
    %247 = arith.mulf %245, %246 : vector<16x1xf32>
    %248 = math.sqrt %247 : vector<16x1xf32>
    %cst_123 = arith.constant 9.99999997E-7 : f32
    %249 = vector.broadcast %cst_123 : f32 to vector<16x1xf32>
    %250 = arith.addf %248, %249 : vector<16x1xf32>
    %251 = tpu.reciprocal %250 : vector<16x1xf32> -> vector<16x1xf32>
    %252 = vector.broadcast %234 : vector<1x32xf32> to vector<16x32xf32>
    %253 = arith.mulf %252, %242 : vector<16x32xf32>
    %254 = vector.broadcast %251 : vector<16x1xf32> to vector<16x32xf32>
    %255 = arith.mulf %253, %254 : vector<16x32xf32>
    %256 = vector.broadcast %236 : vector<1x32xf32> to vector<16x32xf32>
    %257 = arith.addf %255, %256 : vector<16x32xf32>
    %c1_124 = arith.constant 1 : index
    %c0_125 = arith.constant 0 : index
    %c0_126 = arith.constant 0 : index
    %258 = vector.load %arg14[%c1_124, %c0_125, %c0_126] : memref<2x16x32xf32, #tpu.memory_space<vmem>>, vector<1x16x32xf32>
    %259 = vector.shape_cast %258 : vector<1x16x32xf32> to vector<16x32xf32>
    %260 = vector.shape_cast %257 : vector<16x32xf32> to vector<1x16x32xf32>
    tpu.vector_store %arg14[%c1_124, %c0_125, %c0_126], %260 {strides = array<i32>} : memref<2x16x32xf32, #tpu.memory_space<vmem>>, vector<1x16x32xf32>,
    return
  }
}

</mosaic_0001>

<llo_original>
// kernel: tpu_custom_call.1
$region0: #{tpu_custom_call.1}
  #allocation0 [shape = 'u32[]', space=smem, size = 0x4, offset = 0x4, fixed_abs, tag = 'smem constant byte address 0x4 - core index']
  #allocation1 [shape = 'u32[72,128]{1,0:T(1,128)}', space=vmem, size = 0x9000, scoped, tag = 'internal scratch']
  %s0 = inlined_call_operand.hbm [shape: f32[16,32], index: 0, kind: input, shape index: {}]
  %s1 = inlined_call_operand.hbm [shape: f32[16,32], index: 1, kind: input, shape index: {}]
  %s2 = inlined_call_operand.vmem [shape: f32[2,32,32], index: 2, kind: input, shape index: {}]
  %s3 = inlined_call_operand.vmem [shape: f32[2,32,32], index: 3, kind: input, shape index: {}]
  %s4 = inlined_call_operand.vmem [shape: f32[2,32,32], index: 4, kind: input, shape index: {}]
  %s5 = inlined_call_operand.hbm [shape: f32[2,4,8,32], index: 5, kind: input, shape index: {}]
  %s6 = inlined_call_operand.vmem [shape: f32[2,1,32], index: 6, kind: input, shape index: {}]
  %s7 = inlined_call_operand.vmem [shape: f32[2,1,32], index: 7, kind: input, shape index: {}]
  %s8 = inlined_call_operand.hbm [shape: f32[2,32,64], index: 8, kind: input, shape index: {}]
  %s9 = inlined_call_operand.vmem [shape: f32[2,1,64], index: 9, kind: input, shape index: {}]
  %s10 = inlined_call_operand.vmem [shape: f32[2,64,32], index: 10, kind: input, shape index: {}]
  %s11 = inlined_call_operand.vmem [shape: f32[2,1,32], index: 11, kind: input, shape index: {}]
  %s12 = inlined_call_operand.vmem [shape: f32[2,1,32], index: 12, kind: input, shape index: {}]
  %s13 = inlined_call_operand.hbm [shape: f32[2,1,32], index: 13, kind: input, shape index: {}]
  %s14 = inlined_call_operand.hbm [shape: f32[2,16,32], index: 14, kind: output, shape index: {}]
  %s15 = sld [smem:[#allocation0]]
  $region86: #{tpu_custom_call.1} parent=0
    _
  %s17 = ssub.s32 1, %s15
  %s18 = scalar_select 0, %s17, %s15
  $region1: #{tpu_custom_call.1} parent=0
    #allocation2 [shape = 'u8[8192]{0}', space=vmem, size = 0x2000, scoped, tag = 'input window, operand 0, single buffered']
    #allocation3 [shape = 's32[1]{0}', space=sflag, size = 0x4, scoped, tag = 'scoped memory for tpu_custom_call.1']
    #allocation4 [shape = 's32[1]{0}', space=sflag, size = 0x4, scoped, tag = 'scoped memory for tpu_custom_call.1']
    #allocation5 [shape = 'u8[8192]{0}', space=vmem, size = 0x2000, scoped, tag = 'input window, operand 1, single buffered']
    #allocation6 [shape = 's32[1]{0}', space=sflag, size = 0x4, scoped, tag = 'scoped memory for tpu_custom_call.1']
    #allocation7 [shape = 'u8[32768]{0}', space=vmem, size = 0x8000, scoped, tag = 'input window, operand 5, single buffered']
    #allocation8 [shape = 'u8[32768]{0}', space=vmem, size = 0x8000, scoped, tag = 'input window, operand 8, single buffered']
    #allocation9 [shape = 's32[1]{0}', space=sflag, size = 0x4, scoped, tag = 'scoped memory for tpu_custom_call.1']
    #allocation10 [shape = 'u8[1024]{0}', space=vmem, size = 0x400, scoped, tag = 'input window, operand 13, single buffered']
    #allocation11 [shape = 'u8[16384]{0}', space=vmem, size = 0x4000, scoped, tag = 'output window, operand 0, single buffered']
    %19 = vsyncpa [#allocation3], 0
    %20 = vsyncpa [#allocation6], 0
    %21 = vsyncpa [#allocation9], 0
    %22 = vsyncpa [#allocation4], 0
    // Predicated region
    $region2: #{tpu_custom_call.1} parent=1 // pred_check
      _
    $region3: #{tpu_custom_call.1} parent=1 // pred_check_branch
      %24 = sbr.rel (0) target = $region5
    $region4: #{tpu_custom_call.1} parent=1 // pred_region
      %26 = vsyncadd [#allocation3], 0
      %s27 = sshll.u32 %s0, 4
      %s28 = int_to_ptr.hbm [resolvable:$true] %s27
      %s29 = sshll.u32 [#allocation2], 4
      %s30 = int_to_ptr.vmem [resolvable:$true] %s29
      %35 = dma.hbm_to_vmem [thread:$0]  %s28, 256, %s30, [#allocation3], 128, 128, 8
    $region5: #{tpu_custom_call.1} parent=1 // pred_fallthru
      _
    // Predicated region
    $region6: #{tpu_custom_call.1} parent=1 // pred_check
      _
    $region7: #{tpu_custom_call.1} parent=1 // pred_check_branch
      %37 = sbr.rel (0) target = $region9
    $region8: #{tpu_custom_call.1} parent=1 // pred_region
      %39 = vsyncadd [#allocation6], 0
      %s40 = sshll.u32 %s1, 4
      %s41 = int_to_ptr.hbm [resolvable:$true] %s40
      %s42 = sshll.u32 [#allocation5], 4
      %s43 = int_to_ptr.vmem [resolvable:$true] %s42
      %48 = dma.hbm_to_vmem [thread:$0]  %s41, 256, %s43, [#allocation6], 128, 128, 8
    $region9: #{tpu_custom_call.1} parent=1 // pred_fallthru
      _
    // Predicated region
    $region10: #{tpu_custom_call.1} parent=1 // pred_check
      _
    $region11: #{tpu_custom_call.1} parent=1 // pred_check_branch
      %50 = sbr.rel (0) target = $region13
    $region12: #{tpu_custom_call.1} parent=1 // pred_region
      _
    $region13: #{tpu_custom_call.1} parent=1 // pred_fallthru
      _
    // Predicated region
    $region14: #{tpu_custom_call.1} parent=1 // pred_check
      _
    $region15: #{tpu_custom_call.1} parent=1 // pred_check_branch
      %52 = sbr.rel (0) target = $region17
    $region16: #{tpu_custom_call.1} parent=1 // pred_region
      _
    $region17: #{tpu_custom_call.1} parent=1 // pred_fallthru
      _
    // Predicated region
    $region18: #{tpu_custom_call.1} parent=1 // pred_check
      _
    $region19: #{tpu_custom_call.1} parent=1 // pred_check_branch
      %54 = sbr.rel (0) target = $region21
    $region20: #{tpu_custom_call.1} parent=1 // pred_region
      _
    $region21: #{tpu_custom_call.1} parent=1 // pred_fallthru
      _
    // Predicated region
    $region22: #{tpu_custom_call.1} parent=1 // pred_check
      _
    $region23: #{tpu_custom_call.1} parent=1 // pred_check_branch
      %56 = sbr.rel (0) target = $region25
    $region24: #{tpu_custom_call.1} parent=1 // pred_region
      %58 = vsyncadd [#allocation6], 0
      %s59 = sshll.u32 %s5, 4
      %s60 = int_to_ptr.hbm [resolvable:$true] %s59
      %s61 = sshll.u32 [#allocation7], 4
      %s62 = int_to_ptr.vmem [resolvable:$true] %s61
      %67 = dma.hbm_to_vmem [thread:$0]  %s60, 1024, %s62, [#allocation6], 128, 128, 8
    $region25: #{tpu_custom_call.1} parent=1 // pred_fallthru
      _
    // Predicated region
    $region26: #{tpu_custom_call.1} parent=1 // pred_check
      _
    $region27: #{tpu_custom_call.1} parent=1 // pred_check_branch
      %69 = sbr.rel (0) target = $region29
    $region28: #{tpu_custom_call.1} parent=1 // pred_region
      _
    $region29: #{tpu_custom_call.1} parent=1 // pred_fallthru
      _
    // Predicated region
    $region30: #{tpu_custom_call.1} parent=1 // pred_check
      _
    $region31: #{tpu_custom_call.1} parent=1 // pred_check_branch
      %71 = sbr.rel (0) target = $region33
    $region32: #{tpu_custom_call.1} parent=1 // pred_region
      _
    $region33: #{tpu_custom_call.1} parent=1 // pred_fallthru
      _
    // Predicated region
    $region34: #{tpu_custom_call.1} parent=1 // pred_check
      _
    $region35: #{tpu_custom_call.1} parent=1 // pred_check_branch
      %73 = sbr.rel (0) target = $region37
    $region36: #{tpu_custom_call.1} parent=1 // pred_region
      %75 = vsyncadd [#allocation9], 0
      %s76 = sshll.u32 %s8, 4
      %s77 = int_to_ptr.hbm [resolvable:$true] %s76
      %s78 = sshll.u32 [#allocation8], 4
      %s79 = int_to_ptr.vmem [resolvable:$true] %s78
      %84 = dma.hbm_to_vmem [thread:$0]  %s77, 1024, %s79, [#allocation9], 128, 128, 8
    $region37: #{tpu_custom_call.1} parent=1 // pred_fallthru
      _
    // Predicated region
    $region38: #{tpu_custom_call.1} parent=1 // pred_check
      _
    $region39: #{tpu_custom_call.1} parent=1 // pred_check_branch
      %86 = sbr.rel (0) target = $region41
    $region40: #{tpu_custom_call.1} parent=1 // pred_region
      _
    $region41: #{tpu_custom_call.1} parent=1 // pred_fallthru
      _
    // Predicated region
    $region42: #{tpu_custom_call.1} parent=1 // pred_check
      _
    $region43: #{tpu_custom_call.1} parent=1 // pred_check_branch
      %88 = sbr.rel (0) target = $region45
    $region44: #{tpu_custom_call.1} parent=1 // pred_region
      _
    $region45: #{tpu_custom_call.1} parent=1 // pred_fallthru
      _
    // Predicated region
    $region46: #{tpu_custom_call.1} parent=1 // pred_check
      _
    $region47: #{tpu_custom_call.1} parent=1 // pred_check_branch
      %90 = sbr.rel (0) target = $region49
    $region48: #{tpu_custom_call.1} parent=1 // pred_region
      _
    $region49: #{tpu_custom_call.1} parent=1 // pred_fallthru
      _
    // Predicated region
    $region50: #{tpu_custom_call.1} parent=1 // pred_check
      _
    $region51: #{tpu_custom_call.1} parent=1 // pred_check_branch
      %92 = sbr.rel (0) target = $region53
    $region52: #{tpu_custom_call.1} parent=1 // pred_region
      _
    $region53: #{tpu_custom_call.1} parent=1 // pred_fallthru
      _
    // Predicated region
    $region54: #{tpu_custom_call.1} parent=1 // pred_check
      _
    $region55: #{tpu_custom_call.1} parent=1 // pred_check_branch
      %94 = sbr.rel (0) target = $region57
    $region56: #{tpu_custom_call.1} parent=1 // pred_region
      %96 = vsyncadd [#allocation9], 0
      %s97 = sshll.u32 %s13, 4
      %s98 = int_to_ptr.hbm [resolvable:$true] %s97
      %s99 = sshll.u32 [#allocation10], 4
      %s100 = int_to_ptr.vmem [resolvable:$true] %s99
      %105 = dma.hbm_to_vmem [thread:$0]  %s98, 32, %s100, [#allocation9], 16, 16, 1
    $region57: #{tpu_custom_call.1} parent=1 // pred_fallthru
      _
    // Predicated region
    $region58: #{tpu_custom_call.1} parent=1 // pred_check
      _
    $region59: #{tpu_custom_call.1} parent=1 // pred_check_branch
      %107 = sbr.rel (0) target = $region61
    $region60: #{tpu_custom_call.1} parent=1 // pred_region
      %109 = dma.done [#allocation3], 256
    $region61: #{tpu_custom_call.1} parent=1 // pred_fallthru
      _
    // Predicated region
    $region62: #{tpu_custom_call.1} parent=1 // pred_check
      _
    $region63: #{tpu_custom_call.1} parent=1 // pred_check_branch
      %111 = sbr.rel (0) target = $region65
    $region64: #{tpu_custom_call.1} parent=1 // pred_region
      %113 = dma.done [#allocation6], 256
    $region65: #{tpu_custom_call.1} parent=1 // pred_fallthru
      _
    // Predicated region
    $region66: #{tpu_custom_call.1} parent=1 // pred_check
      _
    $region67: #{tpu_custom_call.1} parent=1 // pred_check_branch
      %115 = sbr.rel (0) target = $region69
    $region68: #{tpu_custom_call.1} parent=1 // pred_region
      %117 = dma.done [#allocation6], 1024
    $region69: #{tpu_custom_call.1} parent=1 // pred_fallthru
      _
    // Predicated region
    $region70: #{tpu_custom_call.1} parent=1 // pred_check
      _
    $region71: #{tpu_custom_call.1} parent=1 // pred_check_branch
      %119 = sbr.rel (0) target = $region73
    $region72: #{tpu_custom_call.1} parent=1 // pred_region
      %121 = dma.done [#allocation9], 1024
    $region73: #{tpu_custom_call.1} parent=1 // pred_fallthru
      _
    // Predicated region
    $region74: #{tpu_custom_call.1} parent=1 // pred_check
      _
    $region75: #{tpu_custom_call.1} parent=1 // pred_check_branch
      %123 = sbr.rel (0) target = $region77
    $region76: #{tpu_custom_call.1} parent=1 // pred_region
      %125 = dma.done [#allocation9], 32
    $region77: #{tpu_custom_call.1} parent=1 // pred_fallthru
      _
    %v126 = vld [vmem:[#allocation2] sm:$0xff]
    %v127 = vld [vmem:[#allocation2 + $0x8] sm:$0xff]
    %v128 = vld [vmem:[#allocation5] sm:$0xff]
    %v129 = vld [vmem:[#allocation5 + $0x8] sm:$0xff]
    %v130 = vadd.f32 %v126, %v128
    %v131 = vadd.f32 %v127, %v129
    %v132 = vld [vmem:[%s2] sm:$0xff]
    %v133 = vld [vmem:[%s2 + $0x8] sm:$0xff]
    %v134 = vld [vmem:[%s2 + $0x10] sm:$0xff]
    %v135 = vld [vmem:[%s2 + $0x18] sm:$0xff]
    %vm136 = vcmask 261120
    %v138 = vsel %vm136, %v130, 0
    %v141 = vsel %vm136, %v131, 0
    %143 = vmatpush.msra.mxu0 0.0
    %144 = vmatpush.msra.mxu0 0.0
    %145 = vmatpush.msra.mxu0 0.0
    %146 = vmatpush.msra.mxu0 0.0
    %147 = vmatpush.msra.mxu0 0.0
    %148 = vmatpush.msra.mxu0 0.0
    %149 = vmatpush.msra.mxu0 0.0
    %150 = vmatpush.msra.mxu0 0.0
    %151 = vmatpush.msra.mxu0 0.0
    %152 = vmatpush.msra.mxu0 0.0
    %153 = vmatpush.msra.mxu0 0.0
    %154 = vmatpush.msra.mxu0 0.0
    %155 = vmatpush.msra.mxu0 %v135
    %156 = vmatpush.msra.mxu0 %v134
    %157 = vmatpush.msra.mxu0 %v133
    %158 = vmatpush.msra.mxu0 %v132
    %159 = vmatmul.f32.gmra.mxu0 %v138
    %v160 = vpop.f32.mrf.mxu0
    %v161 = vadd.f32 0.0, %v160
    %162 = vmatmul.f32.gmra.mxu0 %v141
    %v163 = vpop.f32.mrf.mxu0
    %v164 = vadd.f32 0.0, %v163
    %165 = vdwg.mxu0
    %v166 = vmul.f32 %v161, 0.17677669
    %v167 = vmul.f32 %v164, 0.17677669
    %v168 = vld [vmem:[%s3] sm:$0xff]
    %v169 = vld [vmem:[%s3 + $0x8] sm:$0xff]
    %v170 = vld [vmem:[%s3 + $0x10] sm:$0xff]
    %v171 = vld [vmem:[%s3 + $0x18] sm:$0xff]
    %172 = vmatpush.msra.mxu0 0.0
    %173 = vmatpush.msra.mxu0 0.0
    %174 = vmatpush.msra.mxu0 0.0
    %175 = vmatpush.msra.mxu0 0.0
    %176 = vmatpush.msra.mxu0 0.0
    %177 = vmatpush.msra.mxu0 0.0
    %178 = vmatpush.msra.mxu0 0.0
    %179 = vmatpush.msra.mxu0 0.0
    %180 = vmatpush.msra.mxu0 0.0
    %181 = vmatpush.msra.mxu0 0.0
    %182 = vmatpush.msra.mxu0 0.0
    %183 = vmatpush.msra.mxu0 0.0
    %184 = vmatpush.msra.mxu0 %v171
    %185 = vmatpush.msra.mxu0 %v170
    %186 = vmatpush.msra.mxu0 %v169
    %187 = vmatpush.msra.mxu0 %v168
    %188 = vmatmul.f32.gmra.mxu0 %v138
    %v189 = vpop.f32.mrf.mxu0
    %v190 = vadd.f32 0.0, %v189
    %191 = vmatmul.f32.gmra.mxu0 %v141
    %v192 = vpop.f32.mrf.mxu0
    %v193 = vadd.f32 0.0, %v192
    %194 = vdwg.mxu0
    %v195 = vld [vmem:[%s4] sm:$0xff]
    %v196 = vld [vmem:[%s4 + $0x8] sm:$0xff]
    %v197 = vld [vmem:[%s4 + $0x10] sm:$0xff]
    %v198 = vld [vmem:[%s4 + $0x18] sm:$0xff]
    %199 = vmatpush.msra.mxu0 0.0
    %200 = vmatpush.msra.mxu0 0.0
    %201 = vmatpush.msra.mxu0 0.0
    %202 = vmatpush.msra.mxu0 0.0
    %203 = vmatpush.msra.mxu0 0.0
    %204 = vmatpush.msra.mxu0 0.0
    %205 = vmatpush.msra.mxu0 0.0
    %206 = vmatpush.msra.mxu0 0.0
    %207 = vmatpush.msra.mxu0 0.0
    %208 = vmatpush.msra.mxu0 0.0
    %209 = vmatpush.msra.mxu0 0.0
    %210 = vmatpush.msra.mxu0 0.0
    %211 = vmatpush.msra.mxu0 %v198
    %212 = vmatpush.msra.mxu0 %v197
    %213 = vmatpush.msra.mxu0 %v196
    %214 = vmatpush.msra.mxu0 %v195
    %215 = vmatmul.f32.gmra.mxu0 %v138
    %v216 = vpop.f32.mrf.mxu0
    %v217 = vadd.f32 0.0, %v216
    %218 = vmatmul.f32.gmra.mxu0 %v141
    %v219 = vpop.f32.mrf.mxu0
    %v220 = vadd.f32 0.0, %v219
    %221 = vdwg.mxu0
    %224 = vrot.lane.b32.xlu0 %v166, 120
    %v225 = vpop.permute.xlu0 %224
    %226 = vrot.lane.b32.xlu0 %v167, 120
    %v227 = vpop.permute.xlu0 %226
    %228 = vrot.lane.b32.xlu0 %v166, 112
    %v229 = vpop.permute.xlu0 %228
    %230 = vrot.lane.b32.xlu0 %v167, 112
    %v231 = vpop.permute.xlu0 %230
    %232 = vrot.lane.b32.xlu0 %v166, 104
    %v233 = vpop.permute.xlu0 %232
    %234 = vrot.lane.b32.xlu0 %v167, 104
    %v235 = vpop.permute.xlu0 %234
    %238 = vrot.lane.b32.xlu0 %v190, 120
    %v239 = vpop.permute.xlu0 %238
    %240 = vrot.lane.b32.xlu0 %v193, 120
    %v241 = vpop.permute.xlu0 %240
    %242 = vrot.lane.b32.xlu0 %v190, 112
    %v243 = vpop.permute.xlu0 %242
    %244 = vrot.lane.b32.xlu0 %v193, 112
    %v245 = vpop.permute.xlu0 %244
    %246 = vrot.lane.b32.xlu0 %v190, 104
    %v247 = vpop.permute.xlu0 %246
    %248 = vrot.lane.b32.xlu0 %v193, 104
    %v249 = vpop.permute.xlu0 %248
    %252 = vrot.lane.b32.xlu0 %v217, 120
    %v253 = vpop.permute.xlu0 %252
    %254 = vrot.lane.b32.xlu0 %v220, 120
    %v255 = vpop.permute.xlu0 %254
    %258 = vrot.lane.b32.xlu0 %v217, 112
    %v259 = vpop.permute.xlu0 %258
    %260 = vrot.lane.b32.xlu0 %v220, 112
    %v261 = vpop.permute.xlu0 %260
    %264 = vrot.lane.b32.xlu0 %v217, 104
    %v265 = vpop.permute.xlu0 %264
    %266 = vrot.lane.b32.xlu0 %v220, 104
    %v267 = vpop.permute.xlu0 %266
    %vm270 = vcmask 64512
    %v271 = vsel %vm270, %v166, 0
    %v273 = vsel %vm270, %v190, 0
    %275 = vmatpush.xpose.msra.mxu0 0.0
    %276 = vmatpush.xpose.msra.mxu0 0.0
    %277 = vmatpush.xpose.msra.mxu0 0.0
    %278 = vmatpush.xpose.msra.mxu0 0.0
    %279 = vmatpush.xpose.msra.mxu0 0.0
    %280 = vmatpush.xpose.msra.mxu0 0.0
    %281 = vmatpush.xpose.msra.mxu0 0.0
    %282 = vmatpush.xpose.msra.mxu0 0.0
    %283 = vmatpush.xpose.msra.mxu0 0.0
    %284 = vmatpush.xpose.msra.mxu0 0.0
    %285 = vmatpush.xpose.msra.mxu0 0.0
    %286 = vmatpush.xpose.msra.mxu0 0.0
    %287 = vmatpush.xpose.msra.mxu0 0.0
    %288 = vmatpush.xpose.msra.mxu0 0.0
    %289 = vmatpush.xpose.msra.mxu0 0.0
    %290 = vmatpush.xpose.msra.mxu0 %v273
    %291 = vmatmul.f32.gmra.mxu0 %v271
    %v292 = vpop.f32.mrf.mxu0
    %v293 = vadd.f32 0.0, %v292
    %294 = vdwg.mxu0
    %v295 = vsel %vm270, %v167, 0
    %v297 = vsel %vm270, %v193, 0
    %299 = vmatpush.xpose.msra.mxu0 0.0
    %300 = vmatpush.xpose.msra.mxu0 0.0
    %301 = vmatpush.xpose.msra.mxu0 0.0
    %302 = vmatpush.xpose.msra.mxu0 0.0
    %303 = vmatpush.xpose.msra.mxu0 0.0
    %304 = vmatpush.xpose.msra.mxu0 0.0
    %305 = vmatpush.xpose.msra.mxu0 0.0
    %306 = vmatpush.xpose.msra.mxu0 0.0
    %307 = vmatpush.xpose.msra.mxu0 0.0
    %308 = vmatpush.xpose.msra.mxu0 0.0
    %309 = vmatpush.xpose.msra.mxu0 0.0
    %310 = vmatpush.xpose.msra.mxu0 0.0
    %311 = vmatpush.xpose.msra.mxu0 0.0
    %312 = vmatpush.xpose.msra.mxu0 0.0
    %313 = vmatpush.xpose.msra.mxu0 0.0
    %314 = vmatpush.xpose.msra.mxu0 %v297
    %315 = vmatmul.f32.gmra.mxu0 %v295
    %v316 = vpop.f32.mrf.mxu0
    %v317 = vadd.f32 0.0, %v316
    %318 = vdwg.mxu0
    %v319 = vsel %vm270, %v225, 0
    %v321 = vsel %vm270, %v239, 0
    %323 = vmatpush.xpose.msra.mxu0 0.0
    %324 = vmatpush.xpose.msra.mxu0 0.0
    %325 = vmatpush.xpose.msra.mxu0 0.0
    %326 = vmatpush.xpose.msra.mxu0 0.0
    %327 = vmatpush.xpose.msra.mxu0 0.0
    %328 = vmatpush.xpose.msra.mxu0 0.0
    %329 = vmatpush.xpose.msra.mxu0 0.0
    %330 = vmatpush.xpose.msra.mxu0 0.0
    %331 = vmatpush.xpose.msra.mxu0 0.0
    %332 = vmatpush.xpose.msra.mxu0 0.0
    %333 = vmatpush.xpose.msra.mxu0 0.0
    %334 = vmatpush.xpose.msra.mxu0 0.0
    %335 = vmatpush.xpose.msra.mxu0 0.0
    %336 = vmatpush.xpose.msra.mxu0 0.0
    %337 = vmatpush.xpose.msra.mxu0 0.0
    %338 = vmatpush.xpose.msra.mxu0 %v321
    %339 = vmatmul.f32.gmra.mxu0 %v319
    %v340 = vpop.f32.mrf.mxu0
    %v341 = vadd.f32 0.0, %v340
    %342 = vdwg.mxu0
    %v343 = vsel %vm270, %v227, 0
    %v345 = vsel %vm270, %v241, 0
    %347 = vmatpush.xpose.msra.mxu0 0.0
    %348 = vmatpush.xpose.msra.mxu0 0.0
    %349 = vmatpush.xpose.msra.mxu0 0.0
    %350 = vmatpush.xpose.msra.mxu0 0.0
    %351 = vmatpush.xpose.msra.mxu0 0.0
    %352 = vmatpush.xpose.msra.mxu0 0.0
    %353 = vmatpush.xpose.msra.mxu0 0.0
    %354 = vmatpush.xpose.msra.mxu0 0.0
    %355 = vmatpush.xpose.msra.mxu0 0.0
    %356 = vmatpush.xpose.msra.mxu0 0.0
    %357 = vmatpush.xpose.msra.mxu0 0.0
    %358 = vmatpush.xpose.msra.mxu0 0.0
    %359 = vmatpush.xpose.msra.mxu0 0.0
    %360 = vmatpush.xpose.msra.mxu0 0.0
    %361 = vmatpush.xpose.msra.mxu0 0.0
    %362 = vmatpush.xpose.msra.mxu0 %v345
    %363 = vmatmul.f32.gmra.mxu0 %v343
    %v364 = vpop.f32.mrf.mxu0
    %v365 = vadd.f32 0.0, %v364
    %366 = vdwg.mxu0
    %v367 = vsel %vm270, %v229, 0
    %v369 = vsel %vm270, %v243, 0
    %371 = vmatpush.xpose.msra.mxu0 0.0
    %372 = vmatpush.xpose.msra.mxu0 0.0
    %373 = vmatpush.xpose.msra.mxu0 0.0
    %374 = vmatpush.xpose.msra.mxu0 0.0
    %375 = vmatpush.xpose.msra.mxu0 0.0
    %376 = vmatpush.xpose.msra.mxu0 0.0
    %377 = vmatpush.xpose.msra.mxu0 0.0
    %378 = vmatpush.xpose.msra.mxu0 0.0
    %379 = vmatpush.xpose.msra.mxu0 0.0
    %380 = vmatpush.xpose.msra.mxu0 0.0
    %381 = vmatpush.xpose.msra.mxu0 0.0
    %382 = vmatpush.xpose.msra.mxu0 0.0
    %383 = vmatpush.xpose.msra.mxu0 0.0
    %384 = vmatpush.xpose.msra.mxu0 0.0
    %385 = vmatpush.xpose.msra.mxu0 0.0
    %386 = vmatpush.xpose.msra.mxu0 %v369
    %387 = vmatmul.f32.gmra.mxu0 %v367
    %v388 = vpop.f32.mrf.mxu0
    %v389 = vadd.f32 0.0, %v388
    %390 = vdwg.mxu0
    %v391 = vsel %vm270, %v231, 0
    %v393 = vsel %vm270, %v245, 0
    %395 = vmatpush.xpose.msra.mxu0 0.0
    %396 = vmatpush.xpose.msra.mxu0 0.0
    %397 = vmatpush.xpose.msra.mxu0 0.0
    %398 = vmatpush.xpose.msra.mxu0 0.0
    %399 = vmatpush.xpose.msra.mxu0 0.0
    %400 = vmatpush.xpose.msra.mxu0 0.0
    %401 = vmatpush.xpose.msra.mxu0 0.0
    %402 = vmatpush.xpose.msra.mxu0 0.0
    %403 = vmatpush.xpose.msra.mxu0 0.0
    %404 = vmatpush.xpose.msra.mxu0 0.0
    %405 = vmatpush.xpose.msra.mxu0 0.0
    %406 = vmatpush.xpose.msra.mxu0 0.0
    %407 = vmatpush.xpose.msra.mxu0 0.0
    %408 = vmatpush.xpose.msra.mxu0 0.0
    %409 = vmatpush.xpose.msra.mxu0 0.0
    %410 = vmatpush.xpose.msra.mxu0 %v393
    %411 = vmatmul.f32.gmra.mxu0 %v391
    %v412 = vpop.f32.mrf.mxu0
    %v413 = vadd.f32 0.0, %v412
    %414 = vdwg.mxu0
    %v415 = vsel %vm270, %v233, 0
    %v417 = vsel %vm270, %v247, 0
    %419 = vmatpush.xpose.msra.mxu0 0.0
    %420 = vmatpush.xpose.msra.mxu0 0.0
    %421 = vmatpush.xpose.msra.mxu0 0.0
    %422 = vmatpush.xpose.msra.mxu0 0.0
    %423 = vmatpush.xpose.msra.mxu0 0.0
    %424 = vmatpush.xpose.msra.mxu0 0.0
    %425 = vmatpush.xpose.msra.mxu0 0.0
    %426 = vmatpush.xpose.msra.mxu0 0.0
    %427 = vmatpush.xpose.msra.mxu0 0.0
    %428 = vmatpush.xpose.msra.mxu0 0.0
    %429 = vmatpush.xpose.msra.mxu0 0.0
    %430 = vmatpush.xpose.msra.mxu0 0.0
    %431 = vmatpush.xpose.msra.mxu0 0.0
    %432 = vmatpush.xpose.msra.mxu0 0.0
    %433 = vmatpush.xpose.msra.mxu0 0.0
    %434 = vmatpush.xpose.msra.mxu0 %v417
    %435 = vmatmul.f32.gmra.mxu0 %v415
    %v436 = vpop.f32.mrf.mxu0
    %v437 = vadd.f32 0.0, %v436
    %438 = vdwg.mxu0
    %v439 = vsel %vm270, %v235, 0
    %v441 = vsel %vm270, %v249, 0
    %443 = vmatpush.xpose.msra.mxu0 0.0
    %444 = vmatpush.xpose.msra.mxu0 0.0
    %445 = vmatpush.xpose.msra.mxu0 0.0
    %446 = vmatpush.xpose.msra.mxu0 0.0
    %447 = vmatpush.xpose.msra.mxu0 0.0
    %448 = vmatpush.xpose.msra.mxu0 0.0
    %449 = vmatpush.xpose.msra.mxu0 0.0
    %450 = vmatpush.xpose.msra.mxu0 0.0
    %451 = vmatpush.xpose.msra.mxu0 0.0
    %452 = vmatpush.xpose.msra.mxu0 0.0
    %453 = vmatpush.xpose.msra.mxu0 0.0
    %454 = vmatpush.xpose.msra.mxu0 0.0
    %455 = vmatpush.xpose.msra.mxu0 0.0
    %456 = vmatpush.xpose.msra.mxu0 0.0
    %457 = vmatpush.xpose.msra.mxu0 0.0
    %458 = vmatpush.xpose.msra.mxu0 %v441
    %459 = vmatmul.f32.gmra.mxu0 %v439
    %v460 = vpop.f32.mrf.mxu0
    %v461 = vadd.f32 0.0, %v460
    %462 = vdwg.mxu0
    %v463 = vsel %vm270, %v293, -inf
    %464 = vmax.xlane.f32.xlu0 %v463
    %v465 = vpop.xlane.xlu0 %464
    %v466 = vsel %vm270, %v317, -inf
    %467 = vmax.xlane.f32.xlu0 %v466
    %v468 = vpop.xlane.xlu0 %467
    %v469 = vsel %vm270, %v341, -inf
    %470 = vmax.xlane.f32.xlu0 %v469
    %v471 = vpop.xlane.xlu0 %470
    %v472 = vsel %vm270, %v365, -inf
    %473 = vmax.xlane.f32.xlu0 %v472
    %v474 = vpop.xlane.xlu0 %473
    %v475 = vsel %vm270, %v389, -inf
    %476 = vmax.xlane.f32.xlu0 %v475
    %v477 = vpop.xlane.xlu0 %476
    %v478 = vsel %vm270, %v413, -inf
    %479 = vmax.xlane.f32.xlu0 %v478
    %v480 = vpop.xlane.xlu0 %479
    %v481 = vsel %vm270, %v437, -inf
    %482 = vmax.xlane.f32.xlu0 %v481
    %v483 = vpop.xlane.xlu0 %482
    %v484 = vsel %vm270, %v461, -inf
    %485 = vmax.xlane.f32.xlu0 %v484
    %v486 = vpop.xlane.xlu0 %485
    %v487 = vsub.f32 %v293, %v465
    %v488 = vsub.f32 %v317, %v468
    %v489 = vsub.f32 %v341, %v471
    %v490 = vsub.f32 %v365, %v474
    %v491 = vsub.f32 %v389, %v477
    %v492 = vsub.f32 %v413, %v480
    %v493 = vsub.f32 %v437, %v483
    %v494 = vsub.f32 %v461, %v486
    %v495 = vmul.f32 %v487, 1.442695
    %v496 = vpow.pop %v495
    %v497 = vmul.f32 %v488, 1.442695
    %v498 = vpow.pop %v497
    %v499 = vmul.f32 %v489, 1.442695
    %v500 = vpow.pop %v499
    %v501 = vmul.f32 %v490, 1.442695
    %v502 = vpow.pop %v501
    %v503 = vmul.f32 %v491, 1.442695
    %v504 = vpow.pop %v503
    %v505 = vmul.f32 %v492, 1.442695
    %v506 = vpow.pop %v505
    %v507 = vmul.f32 %v493, 1.442695
    %v508 = vpow.pop %v507
    %v509 = vmul.f32 %v494, 1.442695
    %v510 = vpow.pop %v509
    %v511 = vsel %vm270, %v496, 0.0
    %512 = vadd.xlane.f32.xlu0 %v511
    %v513 = vpop.xlane.xlu0 %512
    %v514 = vsel %vm270, %v498, 0.0
    %515 = vadd.xlane.f32.xlu0 %v514
    %v516 = vpop.xlane.xlu0 %515
    %v517 = vsel %vm270, %v500, 0.0
    %518 = vadd.xlane.f32.xlu0 %v517
    %v519 = vpop.xlane.xlu0 %518
    %v520 = vsel %vm270, %v502, 0.0
    %521 = vadd.xlane.f32.xlu0 %v520
    %v522 = vpop.xlane.xlu0 %521
    %v523 = vsel %vm270, %v504, 0.0
    %524 = vadd.xlane.f32.xlu0 %v523
    %v525 = vpop.xlane.xlu0 %524
    %v526 = vsel %vm270, %v506, 0.0
    %527 = vadd.xlane.f32.xlu0 %v526
    %v528 = vpop.xlane.xlu0 %527
    %v529 = vsel %vm270, %v508, 0.0
    %530 = vadd.xlane.f32.xlu0 %v529
    %v531 = vpop.xlane.xlu0 %530
    %v532 = vsel %vm270, %v510, 0.0
    %533 = vadd.xlane.f32.xlu0 %v532
    %v534 = vpop.xlane.xlu0 %533
    %v535 = vrcp.pop %v513
    %v536 = vrcp.pop %v516
    %v537 = vrcp.pop %v519
    %v538 = vrcp.pop %v522
    %v539 = vrcp.pop %v525
    %v540 = vrcp.pop %v528
    %v541 = vrcp.pop %v531
    %v542 = vrcp.pop %v534
    %v543 = vmul.f32 %v496, %v535
    %v544 = vmul.f32 %v498, %v536
    %v545 = vmul.f32 %v500, %v537
    %v546 = vmul.f32 %v502, %v538
    %v547 = vmul.f32 %v504, %v539
    %v548 = vmul.f32 %v506, %v540
    %v549 = vmul.f32 %v508, %v541
    %v550 = vmul.f32 %v510, %v542
    %v552 = vsel %vm270, %v543, 0
    %554 = vmatpush.msra.mxu0 0.0
    %555 = vmatpush.msra.mxu0 0.0
    %556 = vmatpush.msra.mxu0 0.0
    %557 = vmatpush.msra.mxu0 0.0
    %558 = vmatpush.msra.mxu0 0.0
    %559 = vmatpush.msra.mxu0 0.0
    %560 = vmatpush.msra.mxu0 0.0
    %561 = vmatpush.msra.mxu0 0.0
    %562 = vmatpush.msra.mxu0 0.0
    %563 = vmatpush.msra.mxu0 0.0
    %564 = vmatpush.msra.mxu0 0.0
    %565 = vmatpush.msra.mxu0 0.0
    %566 = vmatpush.msra.mxu0 0.0
    %567 = vmatpush.msra.mxu0 0.0
    %568 = vmatpush.msra.mxu0 0.0
    %569 = vmatpush.msra.mxu0 %v217
    %570 = vmatmul.f32.gmra.mxu0 %v552
    %v571 = vpop.f32.mrf.mxu0
    %v572 = vadd.f32 0.0, %v571
    %573 = vdwg.mxu0
    %v575 = vsel %vm270, %v544, 0
    %577 = vmatpush.msra.mxu0 0.0
    %578 = vmatpush.msra.mxu0 0.0
    %579 = vmatpush.msra.mxu0 0.0
    %580 = vmatpush.msra.mxu0 0.0
    %581 = vmatpush.msra.mxu0 0.0
    %582 = vmatpush.msra.mxu0 0.0
    %583 = vmatpush.msra.mxu0 0.0
    %584 = vmatpush.msra.mxu0 0.0
    %585 = vmatpush.msra.mxu0 0.0
    %586 = vmatpush.msra.mxu0 0.0
    %587 = vmatpush.msra.mxu0 0.0
    %588 = vmatpush.msra.mxu0 0.0
    %589 = vmatpush.msra.mxu0 0.0
    %590 = vmatpush.msra.mxu0 0.0
    %591 = vmatpush.msra.mxu0 0.0
    %592 = vmatpush.msra.mxu0 %v220
    %593 = vmatmul.f32.gmra.mxu0 %v575
    %v594 = vpop.f32.mrf.mxu0
    %v595 = vadd.f32 0.0, %v594
    %596 = vdwg.mxu0
    %v598 = vsel %vm270, %v545, 0
    %600 = vmatpush.msra.mxu0 0.0
    %601 = vmatpush.msra.mxu0 0.0
    %602 = vmatpush.msra.mxu0 0.0
    %603 = vmatpush.msra.mxu0 0.0
    %604 = vmatpush.msra.mxu0 0.0
    %605 = vmatpush.msra.mxu0 0.0
    %606 = vmatpush.msra.mxu0 0.0
    %607 = vmatpush.msra.mxu0 0.0
    %608 = vmatpush.msra.mxu0 0.0
    %609 = vmatpush.msra.mxu0 0.0
    %610 = vmatpush.msra.mxu0 0.0
    %611 = vmatpush.msra.mxu0 0.0
    %612 = vmatpush.msra.mxu0 0.0
    %613 = vmatpush.msra.mxu0 0.0
    %614 = vmatpush.msra.mxu0 0.0
    %615 = vmatpush.msra.mxu0 %v253
    %616 = vmatmul.f32.gmra.mxu0 %v598
    %v617 = vpop.f32.mrf.mxu0
    %v618 = vadd.f32 0.0, %v617
    %619 = vdwg.mxu0
    %v621 = vsel %vm270, %v546, 0
    %623 = vmatpush.msra.mxu0 0.0
    %624 = vmatpush.msra.mxu0 0.0
    %625 = vmatpush.msra.mxu0 0.0
    %626 = vmatpush.msra.mxu0 0.0
    %627 = vmatpush.msra.mxu0 0.0
    %628 = vmatpush.msra.mxu0 0.0
    %629 = vmatpush.msra.mxu0 0.0
    %630 = vmatpush.msra.mxu0 0.0
    %631 = vmatpush.msra.mxu0 0.0
    %632 = vmatpush.msra.mxu0 0.0
    %633 = vmatpush.msra.mxu0 0.0
    %634 = vmatpush.msra.mxu0 0.0
    %635 = vmatpush.msra.mxu0 0.0
    %636 = vmatpush.msra.mxu0 0.0
    %637 = vmatpush.msra.mxu0 0.0
    %638 = vmatpush.msra.mxu0 %v255
    %639 = vmatmul.f32.gmra.mxu0 %v621
    %v640 = vpop.f32.mrf.mxu0
    %v641 = vadd.f32 0.0, %v640
    %642 = vdwg.mxu0
    %v644 = vsel %vm270, %v547, 0
    %646 = vmatpush.msra.mxu0 0.0
    %647 = vmatpush.msra.mxu0 0.0
    %648 = vmatpush.msra.mxu0 0.0
    %649 = vmatpush.msra.mxu0 0.0
    %650 = vmatpush.msra.mxu0 0.0
    %651 = vmatpush.msra.mxu0 0.0
    %652 = vmatpush.msra.mxu0 0.0
    %653 = vmatpush.msra.mxu0 0.0
    %654 = vmatpush.msra.mxu0 0.0
    %655 = vmatpush.msra.mxu0 0.0
    %656 = vmatpush.msra.mxu0 0.0
    %657 = vmatpush.msra.mxu0 0.0
    %658 = vmatpush.msra.mxu0 0.0
    %659 = vmatpush.msra.mxu0 0.0
    %660 = vmatpush.msra.mxu0 0.0
    %661 = vmatpush.msra.mxu0 %v259
    %662 = vmatmul.f32.gmra.mxu0 %v644
    %v663 = vpop.f32.mrf.mxu0
    %v664 = vadd.f32 0.0, %v663
    %665 = vdwg.mxu0
    %v667 = vsel %vm270, %v548, 0
    %669 = vmatpush.msra.mxu0 0.0
    %670 = vmatpush.msra.mxu0 0.0
    %671 = vmatpush.msra.mxu0 0.0
    %672 = vmatpush.msra.mxu0 0.0
    %673 = vmatpush.msra.mxu0 0.0
    %674 = vmatpush.msra.mxu0 0.0
    %675 = vmatpush.msra.mxu0 0.0
    %676 = vmatpush.msra.mxu0 0.0
    %677 = vmatpush.msra.mxu0 0.0
    %678 = vmatpush.msra.mxu0 0.0
    %679 = vmatpush.msra.mxu0 0.0
    %680 = vmatpush.msra.mxu0 0.0
    %681 = vmatpush.msra.mxu0 0.0
    %682 = vmatpush.msra.mxu0 0.0
    %683 = vmatpush.msra.mxu0 0.0
    %684 = vmatpush.msra.mxu0 %v261
    %685 = vmatmul.f32.gmra.mxu0 %v667
    %v686 = vpop.f32.mrf.mxu0
    %v687 = vadd.f32 0.0, %v686
    %688 = vdwg.mxu0
    %v690 = vsel %vm270, %v549, 0
    %692 = vmatpush.msra.mxu0 0.0
    %693 = vmatpush.msra.mxu0 0.0
    %694 = vmatpush.msra.mxu0 0.0
    %695 = vmatpush.msra.mxu0 0.0
    %696 = vmatpush.msra.mxu0 0.0
    %697 = vmatpush.msra.mxu0 0.0
    %698 = vmatpush.msra.mxu0 0.0
    %699 = vmatpush.msra.mxu0 0.0
    %700 = vmatpush.msra.mxu0 0.0
    %701 = vmatpush.msra.mxu0 0.0
    %702 = vmatpush.msra.mxu0 0.0
    %703 = vmatpush.msra.mxu0 0.0
    %704 = vmatpush.msra.mxu0 0.0
    %705 = vmatpush.msra.mxu0 0.0
    %706 = vmatpush.msra.mxu0 0.0
    %707 = vmatpush.msra.mxu0 %v265
    %708 = vmatmul.f32.gmra.mxu0 %v690
    %v709 = vpop.f32.mrf.mxu0
    %v710 = vadd.f32 0.0, %v709
    %711 = vdwg.mxu0
    %v713 = vsel %vm270, %v550, 0
    %715 = vmatpush.msra.mxu0 0.0
    %716 = vmatpush.msra.mxu0 0.0
    %717 = vmatpush.msra.mxu0 0.0
    %718 = vmatpush.msra.mxu0 0.0
    %719 = vmatpush.msra.mxu0 0.0
    %720 = vmatpush.msra.mxu0 0.0
    %721 = vmatpush.msra.mxu0 0.0
    %722 = vmatpush.msra.mxu0 0.0
    %723 = vmatpush.msra.mxu0 0.0
    %724 = vmatpush.msra.mxu0 0.0
    %725 = vmatpush.msra.mxu0 0.0
    %726 = vmatpush.msra.mxu0 0.0
    %727 = vmatpush.msra.mxu0 0.0
    %728 = vmatpush.msra.mxu0 0.0
    %729 = vmatpush.msra.mxu0 0.0
    %730 = vmatpush.msra.mxu0 %v267
    %731 = vmatmul.f32.gmra.mxu0 %v713
    %v732 = vpop.f32.mrf.mxu0
    %v733 = vadd.f32 0.0, %v732
    %734 = vdwg.mxu0
    %v735 = vld [vmem:[#allocation7] sm:$0xff]
    %v736 = vld [vmem:[#allocation7 + $0x8] sm:$0xff]
    %v737 = vld [vmem:[#allocation7 + $0x10] sm:$0xff]
    %v738 = vld [vmem:[#allocation7 + $0x18] sm:$0xff]
    %v740 = vsel %vm270, %v572, 0
    %v743 = vsel %vm270, %v595, 0
    %745 = vmatpush.msra.mxu0 0.0
    %746 = vmatpush.msra.mxu0 0.0
    %747 = vmatpush.msra.mxu0 0.0
    %748 = vmatpush.msra.mxu0 0.0
    %749 = vmatpush.msra.mxu0 0.0
    %750 = vmatpush.msra.mxu0 0.0
    %751 = vmatpush.msra.mxu0 0.0
    %752 = vmatpush.msra.mxu0 0.0
    %753 = vmatpush.msra.mxu0 0.0
    %754 = vmatpush.msra.mxu0 0.0
    %755 = vmatpush.msra.mxu0 0.0
    %756 = vmatpush.msra.mxu0 0.0
    %757 = vmatpush.msra.mxu0 0.0
    %758 = vmatpush.msra.mxu0 0.0
    %759 = vmatpush.msra.mxu0 0.0
    %760 = vmatpush.msra.mxu0 %v735
    %761 = vmatmul.f32.gmra.mxu0 %v740
    %v762 = vpop.f32.mrf.mxu0
    %v763 = vadd.f32 0.0, %v762
    %764 = vmatmul.f32.gmra.mxu0 %v743
    %v765 = vpop.f32.mrf.mxu0
    %v766 = vadd.f32 0.0, %v765
    %767 = vdwg.mxu0
    %v769 = vsel %vm270, %v618, 0
    %v772 = vsel %vm270, %v641, 0
    %774 = vmatpush.msra.mxu0 0.0
    %775 = vmatpush.msra.mxu0 0.0
    %776 = vmatpush.msra.mxu0 0.0
    %777 = vmatpush.msra.mxu0 0.0
    %778 = vmatpush.msra.mxu0 0.0
    %779 = vmatpush.msra.mxu0 0.0
    %780 = vmatpush.msra.mxu0 0.0
    %781 = vmatpush.msra.mxu0 0.0
    %782 = vmatpush.msra.mxu0 0.0
    %783 = vmatpush.msra.mxu0 0.0
    %784 = vmatpush.msra.mxu0 0.0
    %785 = vmatpush.msra.mxu0 0.0
    %786 = vmatpush.msra.mxu0 0.0
    %787 = vmatpush.msra.mxu0 0.0
    %788 = vmatpush.msra.mxu0 0.0
    %789 = vmatpush.msra.mxu0 %v736
    %790 = vmatmul.f32.gmra.mxu0 %v769
    %v791 = vpop.f32.mrf.mxu0
    %v792 = vadd.f32 0.0, %v791
    %793 = vmatmul.f32.gmra.mxu0 %v772
    %v794 = vpop.f32.mrf.mxu0
    %v795 = vadd.f32 0.0, %v794
    %796 = vdwg.mxu0
    %v798 = vsel %vm270, %v664, 0
    %v801 = vsel %vm270, %v687, 0
    %803 = vmatpush.msra.mxu0 0.0
    %804 = vmatpush.msra.mxu0 0.0
    %805 = vmatpush.msra.mxu0 0.0
    %806 = vmatpush.msra.mxu0 0.0
    %807 = vmatpush.msra.mxu0 0.0
    %808 = vmatpush.msra.mxu0 0.0
    %809 = vmatpush.msra.mxu0 0.0
    %810 = vmatpush.msra.mxu0 0.0
    %811 = vmatpush.msra.mxu0 0.0
    %812 = vmatpush.msra.mxu0 0.0
    %813 = vmatpush.msra.mxu0 0.0
    %814 = vmatpush.msra.mxu0 0.0
    %815 = vmatpush.msra.mxu0 0.0
    %816 = vmatpush.msra.mxu0 0.0
    %817 = vmatpush.msra.mxu0 0.0
    %818 = vmatpush.msra.mxu0 %v737
    %819 = vmatmul.f32.gmra.mxu0 %v798
    %v820 = vpop.f32.mrf.mxu0
    %v821 = vadd.f32 0.0, %v820
    %822 = vmatmul.f32.gmra.mxu0 %v801
    %v823 = vpop.f32.mrf.mxu0
    %v824 = vadd.f32 0.0, %v823
    %825 = vdwg.mxu0
    %v827 = vsel %vm270, %v710, 0
    %v830 = vsel %vm270, %v733, 0
    %832 = vmatpush.msra.mxu0 0.0
    %833 = vmatpush.msra.mxu0 0.0
    %834 = vmatpush.msra.mxu0 0.0
    %835 = vmatpush.msra.mxu0 0.0
    %836 = vmatpush.msra.mxu0 0.0
    %837 = vmatpush.msra.mxu0 0.0
    %838 = vmatpush.msra.mxu0 0.0
    %839 = vmatpush.msra.mxu0 0.0
    %840 = vmatpush.msra.mxu0 0.0
    %841 = vmatpush.msra.mxu0 0.0
    %842 = vmatpush.msra.mxu0 0.0
    %843 = vmatpush.msra.mxu0 0.0
    %844 = vmatpush.msra.mxu0 0.0
    %845 = vmatpush.msra.mxu0 0.0
    %846 = vmatpush.msra.mxu0 0.0
    %847 = vmatpush.msra.mxu0 %v738
    %848 = vmatmul.f32.gmra.mxu0 %v827
    %v849 = vpop.f32.mrf.mxu0
    %v850 = vadd.f32 0.0, %v849
    %851 = vmatmul.f32.gmra.mxu0 %v830
    %v852 = vpop.f32.mrf.mxu0
    %v853 = vadd.f32 0.0, %v852
    %854 = vdwg.mxu0
    %v855 = vsel %vm136, %v763, 0.0
    %v856 = vsel %vm136, %v792, 0.0
    %v857 = vadd.f32 %v855, %v856
    %v858 = vsel %vm136, %v821, 0.0
    %v859 = vadd.f32 %v857, %v858
    %v860 = vsel %vm136, %v850, 0.0
    %v861 = vadd.f32 %v859, %v860
    %v862 = vsel %vm136, %v766, 0.0
    %v863 = vsel %vm136, %v795, 0.0
    %v864 = vadd.f32 %v862, %v863
    %v865 = vsel %vm136, %v824, 0.0
    %v866 = vadd.f32 %v864, %v865
    %v867 = vsel %vm136, %v853, 0.0
    %v868 = vadd.f32 %v866, %v867
    %v869 = vadd.f32 %v130, %v861
    %v870 = vadd.f32 %v131, %v868
    %v871 = vld [vmem:[%s6] sm:$0x1]
    %v872 = vld [vmem:[%s7] sm:$0x1]
    %v873 = vsel %vm136, %v869, 0.0
    %874 = vadd.xlane.f32.xlu0 %v873
    %v875 = vpop.xlane.xlu0 %874
    %v876 = vsel %vm136, %v870, 0.0
    %877 = vadd.xlane.f32.xlu0 %v876
    %v878 = vpop.xlane.xlu0 %877
    %v879 = vrcp.pop 32.0
    %v880 = vmul.f32 32.0, %v879
    %v881 = vsub.f32 1.0, %v880
    %v882 = vmul.f32 %v879, %v881
    %v883 = vadd.f32 %v879, %v882
    %vm884 = vweird.f32 %v879
    %v885 = vsel %vm884, %v879, %v883
    %v886 = vmul.f32 %v875, %v885
    %v887 = vmul.f32 %v878, %v885
    %v888 = vsub.f32 %v869, %v886
    %v889 = vsub.f32 %v870, %v887
    %v890 = vmul.f32 %v888, %v888
    %v891 = vmul.f32 %v889, %v889
    %v892 = vsel %vm136, %v890, 0.0
    %893 = vadd.xlane.f32.xlu0 %v892
    %v894 = vpop.xlane.xlu0 %893
    %v895 = vsel %vm136, %v891, 0.0
    %896 = vadd.xlane.f32.xlu0 %v895
    %v897 = vpop.xlane.xlu0 %896
    %v898 = vmul.f32 %v894, 0.032258064
    %v899 = vmul.f32 %v897, 0.032258064
    %v900 = vrsqrt.pop %v898
    %v901 = vmul.f32 %v900, %v898
    %v902 = vmul.f32 %v901, %v900
    %v903 = vmul.f32 0.5, %v902
    %v904 = vsub.f32 1.5, %v903
    %v905 = vmul.f32 %v900, %v904
    %v906 = vmul.f32 %v898, %v905
    %vm907 = vcmp.eq.f32.partialorder %v898, inf
    %v908 = vsel %vm907, %v898, %v906
    %vm909 = vcmp.eq.f32.partialorder %v898, 0.0
    %v910 = vand.u32 %v898, 2147483648
    %v911 = vsel %vm909, %v910, %v908
    %v912 = vrsqrt.pop %v899
    %v913 = vmul.f32 %v912, %v899
    %v914 = vmul.f32 %v913, %v912
    %v915 = vmul.f32 0.5, %v914
    %v916 = vsub.f32 1.5, %v915
    %v917 = vmul.f32 %v912, %v916
    %v918 = vmul.f32 %v899, %v917
    %vm919 = vcmp.eq.f32.partialorder %v899, inf
    %v920 = vsel %vm919, %v899, %v918
    %vm921 = vcmp.eq.f32.partialorder %v899, 0.0
    %v922 = vand.u32 %v899, 2147483648
    %v923 = vsel %vm921, %v922, %v920
    %v924 = vadd.f32 %v911, 1e-06
    %v925 = vadd.f32 %v923, 1e-06
    %v926 = vrcp.pop %v924
    %v927 = vmul.f32 %v924, %v926
    %v928 = vsub.f32 1.0, %v927
    %v929 = vmul.f32 %v926, %v928
    %v930 = vadd.f32 %v926, %v929
    %vm931 = vweird.f32 %v924
    %vm932 = vweird.f32 %v926
    %vm933 = vmor %vm931, %vm932
    %v934 = vsel %vm933, %v926, %v930
    %v935 = vand.u32 2147483647, %v924
    %vm936 = vcmp.eq.f32.partialorder %v935, 8.507059e+37
    %v937 = vand.u32 %v924, 2147483648
    %v938 = vor.u32 1.1754944e-38, %v937
    %v939 = vsel %vm936, %v938, %v934
    %v940 = vrcp.pop %v925
    %v941 = vmul.f32 %v925, %v940
    %v942 = vsub.f32 1.0, %v941
    %v943 = vmul.f32 %v940, %v942
    %v944 = vadd.f32 %v940, %v943
    %vm945 = vweird.f32 %v925
    %vm946 = vweird.f32 %v940
    %vm947 = vmor %vm945, %vm946
    %v948 = vsel %vm947, %v940, %v944
    %v949 = vand.u32 2147483647, %v925
    %vm950 = vcmp.eq.f32.partialorder %v949, 8.507059e+37
    %v951 = vand.u32 %v925, 2147483648
    %v952 = vor.u32 1.1754944e-38, %v951
    %v953 = vsel %vm950, %v952, %v948
    %v955 = vperm.slane %v871, 0
    %v957 = vmul.f32 %v955, %v888
    %v958 = vmul.f32 %v955, %v889
    %v959 = vmul.f32 %v957, %v939
    %v960 = vmul.f32 %v958, %v953
    %v962 = vperm.slane %v872, 0
    %v964 = vadd.f32 %v959, %v962
    %v965 = vadd.f32 %v960, %v962
    %v966 = vld [vmem:[#allocation8] sm:$0xff]
    %v967 = vld [vmem:[#allocation8 + $0x8] sm:$0xff]
    %v968 = vld [vmem:[#allocation8 + $0x10] sm:$0xff]
    %v969 = vld [vmem:[#allocation8 + $0x18] sm:$0xff]
    %v970 = vld [vmem:[%s9] sm:$0x1]
    %v972 = vperm.slane %v970, 0
    %v975 = vsel %vm136, %v964, 0
    %v978 = vsel %vm136, %v965, 0
    %980 = vmatpush.msra.mxu0 0.0
    %981 = vmatpush.msra.mxu0 0.0
    %982 = vmatpush.msra.mxu0 0.0
    %983 = vmatpush.msra.mxu0 0.0
    %984 = vmatpush.msra.mxu0 0.0
    %985 = vmatpush.msra.mxu0 0.0
    %986 = vmatpush.msra.mxu0 0.0
    %987 = vmatpush.msra.mxu0 0.0
    %988 = vmatpush.msra.mxu0 0.0
    %989 = vmatpush.msra.mxu0 0.0
    %990 = vmatpush.msra.mxu0 0.0
    %991 = vmatpush.msra.mxu0 0.0
    %992 = vmatpush.msra.mxu0 %v969
    %993 = vmatpush.msra.mxu0 %v968
    %994 = vmatpush.msra.mxu0 %v967
    %995 = vmatpush.msra.mxu0 %v966
    %996 = vmatmul.f32.gmra.mxu0 %v975
    %v997 = vpop.f32.mrf.mxu0
    %v998 = vadd.f32 %v972, %v997
    %999 = vmatmul.f32.gmra.mxu0 %v978
    %v1000 = vpop.f32.mrf.mxu0
    %v1001 = vadd.f32 %v972, %v1000
    %1002 = vdwg.mxu0
    %v1003 = vmax.f32 %v998, 0.0
    %v1004 = vmax.f32 %v1001, 0.0
    %v1005 = vld [vmem:[%s10] sm:$0xff]
    %v1006 = vld [vmem:[%s10 + $0x8] sm:$0xff]
    %v1007 = vld [vmem:[%s10 + $0x10] sm:$0xff]
    %v1008 = vld [vmem:[%s10 + $0x18] sm:$0xff]
    %v1009 = vld [vmem:[%s10 + $0x20] sm:$0xff]
    %v1010 = vld [vmem:[%s10 + $0x28] sm:$0xff]
    %v1011 = vld [vmem:[%s10 + $0x30] sm:$0xff]
    %v1012 = vld [vmem:[%s10 + $0x38] sm:$0xff]
    %v1013 = vld [vmem:[%s11] sm:$0x1]
    %v1015 = vperm.slane %v1013, 0
    %vm1017 = vcmask 523264
    %v1019 = vsel %vm1017, %v1003, 0
    %v1022 = vsel %vm1017, %v1004, 0
    %1024 = vmatpush.msra.mxu0 0.0
    %1025 = vmatpush.msra.mxu0 0.0
    %1026 = vmatpush.msra.mxu0 0.0
    %1027 = vmatpush.msra.mxu0 0.0
    %1028 = vmatpush.msra.mxu0 0.0
    %1029 = vmatpush.msra.mxu0 0.0
    %1030 = vmatpush.msra.mxu0 0.0
    %1031 = vmatpush.msra.mxu0 0.0
    %1032 = vmatpush.msra.mxu0 %v1012
    %1033 = vmatpush.msra.mxu0 %v1011
    %1034 = vmatpush.msra.mxu0 %v1010
    %1035 = vmatpush.msra.mxu0 %v1009
    %1036 = vmatpush.msra.mxu0 %v1008
    %1037 = vmatpush.msra.mxu0 %v1007
    %1038 = vmatpush.msra.mxu0 %v1006
    %1039 = vmatpush.msra.mxu0 %v1005
    %1040 = vmatmul.f32.gmra.mxu0 %v1019
    %v1041 = vpop.f32.mrf.mxu0
    %v1042 = vadd.f32 %v1015, %v1041
    %1043 = vmatmul.f32.gmra.mxu0 %v1022
    %v1044 = vpop.f32.mrf.mxu0
    %v1045 = vadd.f32 %v1015, %v1044
    %1046 = vdwg.mxu0
    %v1047 = vadd.f32 %v964, %v1042
    %v1048 = vadd.f32 %v965, %v1045
    %v1049 = vld [vmem:[%s12] sm:$0x1]
    %v1050 = vld [vmem:[#allocation10] sm:$0x1]
    %v1051 = vsel %vm136, %v1047, 0.0
    %1052 = vadd.xlane.f32.xlu0 %v1051
    %v1053 = vpop.xlane.xlu0 %1052
    %v1054 = vsel %vm136, %v1048, 0.0
    %1055 = vadd.xlane.f32.xlu0 %v1054
    %v1056 = vpop.xlane.xlu0 %1055
    %v1057 = vmul.f32 %v1053, %v885
    %v1058 = vmul.f32 %v1056, %v885
    %v1059 = vsub.f32 %v1047, %v1057
    %v1060 = vsub.f32 %v1048, %v1058
    %v1061 = vmul.f32 %v1059, %v1059
    %v1062 = vmul.f32 %v1060, %v1060
    %v1063 = vsel %vm136, %v1061, 0.0
    %1064 = vadd.xlane.f32.xlu0 %v1063
    %v1065 = vpop.xlane.xlu0 %1064
    %v1066 = vsel %vm136, %v1062, 0.0
    %1067 = vadd.xlane.f32.xlu0 %v1066
    %v1068 = vpop.xlane.xlu0 %1067
    %v1069 = vmul.f32 %v1065, 0.032258064
    %v1070 = vmul.f32 %v1068, 0.032258064
    %v1071 = vrsqrt.pop %v1069
    %v1072 = vmul.f32 %v1071, %v1069
    %v1073 = vmul.f32 %v1072, %v1071
    %v1074 = vmul.f32 0.5, %v1073
    %v1075 = vsub.f32 1.5, %v1074
    %v1076 = vmul.f32 %v1071, %v1075
    %v1077 = vmul.f32 %v1069, %v1076
    %vm1078 = vcmp.eq.f32.partialorder %v1069, inf
    %v1079 = vsel %vm1078, %v1069, %v1077
    %vm1080 = vcmp.eq.f32.partialorder %v1069, 0.0
    %v1081 = vand.u32 %v1069, 2147483648
    %v1082 = vsel %vm1080, %v1081, %v1079
    %v1083 = vrsqrt.pop %v1070
    %v1084 = vmul.f32 %v1083, %v1070
    %v1085 = vmul.f32 %v1084, %v1083
    %v1086 = vmul.f32 0.5, %v1085
    %v1087 = vsub.f32 1.5, %v1086
    %v1088 = vmul.f32 %v1083, %v1087
    %v1089 = vmul.f32 %v1070, %v1088
    %vm1090 = vcmp.eq.f32.partialorder %v1070, inf
    %v1091 = vsel %vm1090, %v1070, %v1089
    %vm1092 = vcmp.eq.f32.partialorder %v1070, 0.0
    %v1093 = vand.u32 %v1070, 2147483648
    %v1094 = vsel %vm1092, %v1093, %v1091
    %v1095 = vadd.f32 %v1082, 1e-06
    %v1096 = vadd.f32 %v1094, 1e-06
    %v1097 = vrcp.pop %v1095
    %v1098 = vmul.f32 %v1095, %v1097
    %v1099 = vsub.f32 1.0, %v1098
    %v1100 = vmul.f32 %v1097, %v1099
    %v1101 = vadd.f32 %v1097, %v1100
    %vm1102 = vweird.f32 %v1095
    %vm1103 = vweird.f32 %v1097
    %vm1104 = vmor %vm1102, %vm1103
    %v1105 = vsel %vm1104, %v1097, %v1101
    %v1106 = vand.u32 2147483647, %v1095
    %vm1107 = vcmp.eq.f32.partialorder %v1106, 8.507059e+37
    %v1108 = vand.u32 %v1095, 2147483648
    %v1109 = vor.u32 1.1754944e-38, %v1108
    %v1110 = vsel %vm1107, %v1109, %v1105
    %v1111 = vrcp.pop %v1096
    %v1112 = vmul.f32 %v1096, %v1111
    %v1113 = vsub.f32 1.0, %v1112
    %v1114 = vmul.f32 %v1111, %v1113
    %v1115 = vadd.f32 %v1111, %v1114
    %vm1116 = vweird.f32 %v1096
    %vm1117 = vweird.f32 %v1111
    %vm1118 = vmor %vm1116, %vm1117
    %v1119 = vsel %vm1118, %v1111, %v1115
    %v1120 = vand.u32 2147483647, %v1096
    %vm1121 = vcmp.eq.f32.partialorder %v1120, 8.507059e+37
    %v1122 = vand.u32 %v1096, 2147483648
    %v1123 = vor.u32 1.1754944e-38, %v1122
    %v1124 = vsel %vm1121, %v1123, %v1119
    %v1126 = vperm.slane %v1049, 0
    %v1128 = vmul.f32 %v1126, %v1059
    %v1129 = vmul.f32 %v1126, %v1060
    %v1130 = vmul.f32 %v1128, %v1110
    %v1131 = vmul.f32 %v1129, %v1124
    %v1133 = vperm.slane %v1050, 0
    %v1135 = vadd.f32 %v1130, %v1133
    %v1136 = vadd.f32 %v1131, %v1133
    %1137 = vst.msk [vmem:[#allocation11] sm:$0xff] %vm136, %v1135
    %1138 = vst.msk [vmem:[#allocation11 + $0x8] sm:$0xff] %vm136, %v1136
    %s1139 = scalar_lea.vmem %s2, 32
    %v1140 = vld [vmem:[%s1139] sm:$0xff]
    %v1141 = vld [vmem:[%s1139 + $0x8] sm:$0xff]
    %v1142 = vld [vmem:[%s1139 + $0x10] sm:$0xff]
    %v1143 = vld [vmem:[%s1139 + $0x18] sm:$0xff]
    %v1145 = vsel %vm136, %v1135, 0
    %v1148 = vsel %vm136, %v1136, 0
    %1150 = vmatpush.msra.mxu0 0.0
    %1151 = vmatpush.msra.mxu0 0.0
    %1152 = vmatpush.msra.mxu0 0.0
    %1153 = vmatpush.msra.mxu0 0.0
    %1154 = vmatpush.msra.mxu0 0.0
    %1155 = vmatpush.msra.mxu0 0.0
    %1156 = vmatpush.msra.mxu0 0.0
    %1157 = vmatpush.msra.mxu0 0.0
    %1158 = vmatpush.msra.mxu0 0.0
    %1159 = vmatpush.msra.mxu0 0.0
    %1160 = vmatpush.msra.mxu0 0.0
    %1161 = vmatpush.msra.mxu0 0.0
    %1162 = vmatpush.msra.mxu0 %v1143
    %1163 = vmatpush.msra.mxu0 %v1142
    %1164 = vmatpush.msra.mxu0 %v1141
    %1165 = vmatpush.msra.mxu0 %v1140
    %1166 = vmatmul.f32.gmra.mxu0 %v1145
    %v1167 = vpop.f32.mrf.mxu0
    %v1168 = vadd.f32 0.0, %v1167
    %1169 = vmatmul.f32.gmra.mxu0 %v1148
    %v1170 = vpop.f32.mrf.mxu0
    %v1171 = vadd.f32 0.0, %v1170
    %1172 = vdwg.mxu0
    %v1173 = vmul.f32 %v1168, 0.17677669
    %v1174 = vmul.f32 %v1171, 0.17677669
    %s1175 = scalar_lea.vmem %s3, 32
    %v1176 = vld [vmem:[%s1175] sm:$0xff]
    %v1177 = vld [vmem:[%s1175 + $0x8] sm:$0xff]
    %v1178 = vld [vmem:[%s1175 + $0x10] sm:$0xff]
    %v1179 = vld [vmem:[%s1175 + $0x18] sm:$0xff]
    %1180 = vmatpush.msra.mxu0 0.0
    %1181 = vmatpush.msra.mxu0 0.0
    %1182 = vmatpush.msra.mxu0 0.0
    %1183 = vmatpush.msra.mxu0 0.0
    %1184 = vmatpush.msra.mxu0 0.0
    %1185 = vmatpush.msra.mxu0 0.0
    %1186 = vmatpush.msra.mxu0 0.0
    %1187 = vmatpush.msra.mxu0 0.0
    %1188 = vmatpush.msra.mxu0 0.0
    %1189 = vmatpush.msra.mxu0 0.0
    %1190 = vmatpush.msra.mxu0 0.0
    %1191 = vmatpush.msra.mxu0 0.0
    %1192 = vmatpush.msra.mxu0 %v1179
    %1193 = vmatpush.msra.mxu0 %v1178
    %1194 = vmatpush.msra.mxu0 %v1177
    %1195 = vmatpush.msra.mxu0 %v1176
    %1196 = vmatmul.f32.gmra.mxu0 %v1145
    %v1197 = vpop.f32.mrf.mxu0
    %v1198 = vadd.f32 0.0, %v1197
    %1199 = vmatmul.f32.gmra.mxu0 %v1148
    %v1200 = vpop.f32.mrf.mxu0
    %v1201 = vadd.f32 0.0, %v1200
    %1202 = vdwg.mxu0
    %s1203 = scalar_lea.vmem %s4, 32
    %v1204 = vld [vmem:[%s1203] sm:$0xff]
    %v1205 = vld [vmem:[%s1203 + $0x8] sm:$0xff]
    %v1206 = vld [vmem:[%s1203 + $0x10] sm:$0xff]
    %v1207 = vld [vmem:[%s1203 + $0x18] sm:$0xff]
    %1208 = vmatpush.msra.mxu0 0.0
    %1209 = vmatpush.msra.mxu0 0.0
    %1210 = vmatpush.msra.mxu0 0.0
    %1211 = vmatpush.msra.mxu0 0.0
    %1212 = vmatpush.msra.mxu0 0.0
    %1213 = vmatpush.msra.mxu0 0.0
    %1214 = vmatpush.msra.mxu0 0.0
    %1215 = vmatpush.msra.mxu0 0.0
    %1216 = vmatpush.msra.mxu0 0.0
    %1217 = vmatpush.msra.mxu0 0.0
    %1218 = vmatpush.msra.mxu0 0.0
    %1219 = vmatpush.msra.mxu0 0.0
    %1220 = vmatpush.msra.mxu0 %v1207
    %1221 = vmatpush.msra.mxu0 %v1206
    %1222 = vmatpush.msra.mxu0 %v1205
    %1223 = vmatpush.msra.mxu0 %v1204
    %1224 = vmatmul.f32.gmra.mxu0 %v1145
    %v1225 = vpop.f32.mrf.mxu0
    %v1226 = vadd.f32 0.0, %v1225
    %1227 = vmatmul.f32.gmra.mxu0 %v1148
    %v1228 = vpop.f32.mrf.mxu0
    %v1229 = vadd.f32 0.0, %v1228
    %1230 = vdwg.mxu0
    %1233 = vrot.lane.b32.xlu0 %v1173, 120
    %v1234 = vpop.permute.xlu0 %1233
    %1235 = vrot.lane.b32.xlu0 %v1174, 120
    %v1236 = vpop.permute.xlu0 %1235
    %1237 = vrot.lane.b32.xlu0 %v1173, 112
    %v1238 = vpop.permute.xlu0 %1237
    %1239 = vrot.lane.b32.xlu0 %v1174, 112
    %v1240 = vpop.permute.xlu0 %1239
    %1241 = vrot.lane.b32.xlu0 %v1173, 104
    %v1242 = vpop.permute.xlu0 %1241
    %1243 = vrot.lane.b32.xlu0 %v1174, 104
    %v1244 = vpop.permute.xlu0 %1243
    %1247 = vrot.lane.b32.xlu0 %v1198, 120
    %v1248 = vpop.permute.xlu0 %1247
    %1249 = vrot.lane.b32.xlu0 %v1201, 120
    %v1250 = vpop.permute.xlu0 %1249
    %1251 = vrot.lane.b32.xlu0 %v1198, 112
    %v1252 = vpop.permute.xlu0 %1251
    %1253 = vrot.lane.b32.xlu0 %v1201, 112
    %v1254 = vpop.permute.xlu0 %1253
    %1255 = vrot.lane.b32.xlu0 %v1198, 104
    %v1256 = vpop.permute.xlu0 %1255
    %1257 = vrot.lane.b32.xlu0 %v1201, 104
    %v1258 = vpop.permute.xlu0 %1257
    %1261 = vrot.lane.b32.xlu0 %v1226, 120
    %v1262 = vpop.permute.xlu0 %1261
    %1263 = vrot.lane.b32.xlu0 %v1229, 120
    %v1264 = vpop.permute.xlu0 %1263
    %1267 = vrot.lane.b32.xlu0 %v1226, 112
    %v1268 = vpop.permute.xlu0 %1267
    %1269 = vrot.lane.b32.xlu0 %v1229, 112
    %v1270 = vpop.permute.xlu0 %1269
    %1273 = vrot.lane.b32.xlu0 %v1226, 104
    %v1274 = vpop.permute.xlu0 %1273
    %1275 = vrot.lane.b32.xlu0 %v1229, 104
    %v1276 = vpop.permute.xlu0 %1275
    %v1279 = vsel %vm270, %v1173, 0
    %v1281 = vsel %vm270, %v1198, 0
    %1283 = vmatpush.xpose.msra.mxu0 0.0
    %1284 = vmatpush.xpose.msra.mxu0 0.0
    %1285 = vmatpush.xpose.msra.mxu0 0.0
    %1286 = vmatpush.xpose.msra.mxu0 0.0
    %1287 = vmatpush.xpose.msra.mxu0 0.0
    %1288 = vmatpush.xpose.msra.mxu0 0.0
    %1289 = vmatpush.xpose.msra.mxu0 0.0
    %1290 = vmatpush.xpose.msra.mxu0 0.0
    %1291 = vmatpush.xpose.msra.mxu0 0.0
    %1292 = vmatpush.xpose.msra.mxu0 0.0
    %1293 = vmatpush.xpose.msra.mxu0 0.0
    %1294 = vmatpush.xpose.msra.mxu0 0.0
    %1295 = vmatpush.xpose.msra.mxu0 0.0
    %1296 = vmatpush.xpose.msra.mxu0 0.0
    %1297 = vmatpush.xpose.msra.mxu0 0.0
    %1298 = vmatpush.xpose.msra.mxu0 %v1281
    %1299 = vmatmul.f32.gmra.mxu0 %v1279
    %v1300 = vpop.f32.mrf.mxu0
    %v1301 = vadd.f32 0.0, %v1300
    %1302 = vdwg.mxu0
    %v1303 = vsel %vm270, %v1174, 0
    %v1305 = vsel %vm270, %v1201, 0
    %1307 = vmatpush.xpose.msra.mxu0 0.0
    %1308 = vmatpush.xpose.msra.mxu0 0.0
    %1309 = vmatpush.xpose.msra.mxu0 0.0
    %1310 = vmatpush.xpose.msra.mxu0 0.0
    %1311 = vmatpush.xpose.msra.mxu0 0.0
    %1312 = vmatpush.xpose.msra.mxu0 0.0
    %1313 = vmatpush.xpose.msra.mxu0 0.0
    %1314 = vmatpush.xpose.msra.mxu0 0.0
    %1315 = vmatpush.xpose.msra.mxu0 0.0
    %1316 = vmatpush.xpose.msra.mxu0 0.0
    %1317 = vmatpush.xpose.msra.mxu0 0.0
    %1318 = vmatpush.xpose.msra.mxu0 0.0
    %1319 = vmatpush.xpose.msra.mxu0 0.0
    %1320 = vmatpush.xpose.msra.mxu0 0.0
    %1321 = vmatpush.xpose.msra.mxu0 0.0
    %1322 = vmatpush.xpose.msra.mxu0 %v1305
    %1323 = vmatmul.f32.gmra.mxu0 %v1303
    %v1324 = vpop.f32.mrf.mxu0
    %v1325 = vadd.f32 0.0, %v1324
    %1326 = vdwg.mxu0
    %v1327 = vsel %vm270, %v1234, 0
    %v1329 = vsel %vm270, %v1248, 0
    %1331 = vmatpush.xpose.msra.mxu0 0.0
    %1332 = vmatpush.xpose.msra.mxu0 0.0
    %1333 = vmatpush.xpose.msra.mxu0 0.0
    %1334 = vmatpush.xpose.msra.mxu0 0.0
    %1335 = vmatpush.xpose.msra.mxu0 0.0
    %1336 = vmatpush.xpose.msra.mxu0 0.0
    %1337 = vmatpush.xpose.msra.mxu0 0.0
    %1338 = vmatpush.xpose.msra.mxu0 0.0
    %1339 = vmatpush.xpose.msra.mxu0 0.0
    %1340 = vmatpush.xpose.msra.mxu0 0.0
    %1341 = vmatpush.xpose.msra.mxu0 0.0
    %1342 = vmatpush.xpose.msra.mxu0 0.0
    %1343 = vmatpush.xpose.msra.mxu0 0.0
    %1344 = vmatpush.xpose.msra.mxu0 0.0
    %1345 = vmatpush.xpose.msra.mxu0 0.0
    %1346 = vmatpush.xpose.msra.mxu0 %v1329
    %1347 = vmatmul.f32.gmra.mxu0 %v1327
    %v1348 = vpop.f32.mrf.mxu0
    %v1349 = vadd.f32 0.0, %v1348
    %1350 = vdwg.mxu0
    %v1351 = vsel %vm270, %v1236, 0
    %v1353 = vsel %vm270, %v1250, 0
    %1355 = vmatpush.xpose.msra.mxu0 0.0
    %1356 = vmatpush.xpose.msra.mxu0 0.0
    %1357 = vmatpush.xpose.msra.mxu0 0.0
    %1358 = vmatpush.xpose.msra.mxu0 0.0
    %1359 = vmatpush.xpose.msra.mxu0 0.0
    %1360 = vmatpush.xpose.msra.mxu0 0.0
    %1361 = vmatpush.xpose.msra.mxu0 0.0
    %1362 = vmatpush.xpose.msra.mxu0 0.0
    %1363 = vmatpush.xpose.msra.mxu0 0.0
    %1364 = vmatpush.xpose.msra.mxu0 0.0
    %1365 = vmatpush.xpose.msra.mxu0 0.0
    %1366 = vmatpush.xpose.msra.mxu0 0.0
    %1367 = vmatpush.xpose.msra.mxu0 0.0
    %1368 = vmatpush.xpose.msra.mxu0 0.0
    %1369 = vmatpush.xpose.msra.mxu0 0.0
    %1370 = vmatpush.xpose.msra.mxu0 %v1353
    %1371 = vmatmul.f32.gmra.mxu0 %v1351
    %v1372 = vpop.f32.mrf.mxu0
    %v1373 = vadd.f32 0.0, %v1372
    %1374 = vdwg.mxu0
    %v1375 = vsel %vm270, %v1238, 0
    %v1377 = vsel %vm270, %v1252, 0
    %1379 = vmatpush.xpose.msra.mxu0 0.0
    %1380 = vmatpush.xpose.msra.mxu0 0.0
    %1381 = vmatpush.xpose.msra.mxu0 0.0
    %1382 = vmatpush.xpose.msra.mxu0 0.0
    %1383 = vmatpush.xpose.msra.mxu0 0.0
    %1384 = vmatpush.xpose.msra.mxu0 0.0
    %1385 = vmatpush.xpose.msra.mxu0 0.0
    %1386 = vmatpush.xpose.msra.mxu0 0.0
    %1387 = vmatpush.xpose.msra.mxu0 0.0
    %1388 = vmatpush.xpose.msra.mxu0 0.0
    %1389 = vmatpush.xpose.msra.mxu0 0.0
    %1390 = vmatpush.xpose.msra.mxu0 0.0
    %1391 = vmatpush.xpose.msra.mxu0 0.0
    %1392 = vmatpush.xpose.msra.mxu0 0.0
    %1393 = vmatpush.xpose.msra.mxu0 0.0
    %1394 = vmatpush.xpose.msra.mxu0 %v1377
    %1395 = vmatmul.f32.gmra.mxu0 %v1375
    %v1396 = vpop.f32.mrf.mxu0
    %v1397 = vadd.f32 0.0, %v1396
    %1398 = vdwg.mxu0
    %v1399 = vsel %vm270, %v1240, 0
    %v1401 = vsel %vm270, %v1254, 0
    %1403 = vmatpush.xpose.msra.mxu0 0.0
    %1404 = vmatpush.xpose.msra.mxu0 0.0
    %1405 = vmatpush.xpose.msra.mxu0 0.0
    %1406 = vmatpush.xpose.msra.mxu0 0.0
    %1407 = vmatpush.xpose.msra.mxu0 0.0
    %1408 = vmatpush.xpose.msra.mxu0 0.0
    %1409 = vmatpush.xpose.msra.mxu0 0.0
    %1410 = vmatpush.xpose.msra.mxu0 0.0
    %1411 = vmatpush.xpose.msra.mxu0 0.0
    %1412 = vmatpush.xpose.msra.mxu0 0.0
    %1413 = vmatpush.xpose.msra.mxu0 0.0
    %1414 = vmatpush.xpose.msra.mxu0 0.0
    %1415 = vmatpush.xpose.msra.mxu0 0.0
    %1416 = vmatpush.xpose.msra.mxu0 0.0
    %1417 = vmatpush.xpose.msra.mxu0 0.0
    %1418 = vmatpush.xpose.msra.mxu0 %v1401
    %1419 = vmatmul.f32.gmra.mxu0 %v1399
    %v1420 = vpop.f32.mrf.mxu0
    %v1421 = vadd.f32 0.0, %v1420
    %1422 = vdwg.mxu0
    %v1423 = vsel %vm270, %v1242, 0
    %v1425 = vsel %vm270, %v1256, 0
    %1427 = vmatpush.xpose.msra.mxu0 0.0
    %1428 = vmatpush.xpose.msra.mxu0 0.0
    %1429 = vmatpush.xpose.msra.mxu0 0.0
    %1430 = vmatpush.xpose.msra.mxu0 0.0
    %1431 = vmatpush.xpose.msra.mxu0 0.0
    %1432 = vmatpush.xpose.msra.mxu0 0.0
    %1433 = vmatpush.xpose.msra.mxu0 0.0
    %1434 = vmatpush.xpose.msra.mxu0 0.0
    %1435 = vmatpush.xpose.msra.mxu0 0.0
    %1436 = vmatpush.xpose.msra.mxu0 0.0
    %1437 = vmatpush.xpose.msra.mxu0 0.0
    %1438 = vmatpush.xpose.msra.mxu0 0.0
    %1439 = vmatpush.xpose.msra.mxu0 0.0
    %1440 = vmatpush.xpose.msra.mxu0 0.0
    %1441 = vmatpush.xpose.msra.mxu0 0.0
    %1442 = vmatpush.xpose.msra.mxu0 %v1425
    %1443 = vmatmul.f32.gmra.mxu0 %v1423
    %v1444 = vpop.f32.mrf.mxu0
    %v1445 = vadd.f32 0.0, %v1444
    %1446 = vdwg.mxu0
    %v1447 = vsel %vm270, %v1244, 0
    %v1449 = vsel %vm270, %v1258, 0
    %1451 = vmatpush.xpose.msra.mxu0 0.0
    %1452 = vmatpush.xpose.msra.mxu0 0.0
    %1453 = vmatpush.xpose.msra.mxu0 0.0
    %1454 = vmatpush.xpose.msra.mxu0 0.0
    %1455 = vmatpush.xpose.msra.mxu0 0.0
    %1456 = vmatpush.xpose.msra.mxu0 0.0
    %1457 = vmatpush.xpose.msra.mxu0 0.0
    %1458 = vmatpush.xpose.msra.mxu0 0.0
    %1459 = vmatpush.xpose.msra.mxu0 0.0
    %1460 = vmatpush.xpose.msra.mxu0 0.0
    %1461 = vmatpush.xpose.msra.mxu0 0.0
    %1462 = vmatpush.xpose.msra.mxu0 0.0
    %1463 = vmatpush.xpose.msra.mxu0 0.0
    %1464 = vmatpush.xpose.msra.mxu0 0.0
    %1465 = vmatpush.xpose.msra.mxu0 0.0
    %1466 = vmatpush.xpose.msra.mxu0 %v1449
    %1467 = vmatmul.f32.gmra.mxu0 %v1447
    %v1468 = vpop.f32.mrf.mxu0
    %v1469 = vadd.f32 0.0, %v1468
    %1470 = vdwg.mxu0
    %v1471 = vsel %vm270, %v1301, -inf
    %1472 = vmax.xlane.f32.xlu0 %v1471
    %v1473 = vpop.xlane.xlu0 %1472
    %v1474 = vsel %vm270, %v1325, -inf
    %1475 = vmax.xlane.f32.xlu0 %v1474
    %v1476 = vpop.xlane.xlu0 %1475
    %v1477 = vsel %vm270, %v1349, -inf
    %1478 = vmax.xlane.f32.xlu0 %v1477
    %v1479 = vpop.xlane.xlu0 %1478
    %v1480 = vsel %vm270, %v1373, -inf
    %1481 = vmax.xlane.f32.xlu0 %v1480
    %v1482 = vpop.xlane.xlu0 %1481
    %v1483 = vsel %vm270, %v1397, -inf
    %1484 = vmax.xlane.f32.xlu0 %v1483
    %v1485 = vpop.xlane.xlu0 %1484
    %v1486 = vsel %vm270, %v1421, -inf
    %1487 = vmax.xlane.f32.xlu0 %v1486
    %v1488 = vpop.xlane.xlu0 %1487
    %v1489 = vsel %vm270, %v1445, -inf
    %1490 = vmax.xlane.f32.xlu0 %v1489
    %v1491 = vpop.xlane.xlu0 %1490
    %v1492 = vsel %vm270, %v1469, -inf
    %1493 = vmax.xlane.f32.xlu0 %v1492
    %v1494 = vpop.xlane.xlu0 %1493
    %v1495 = vsub.f32 %v1301, %v1473
    %v1496 = vsub.f32 %v1325, %v1476
    %v1497 = vsub.f32 %v1349, %v1479
    %v1498 = vsub.f32 %v1373, %v1482
    %v1499 = vsub.f32 %v1397, %v1485
    %v1500 = vsub.f32 %v1421, %v1488
    %v1501 = vsub.f32 %v1445, %v1491
    %v1502 = vsub.f32 %v1469, %v1494
    %v1503 = vmul.f32 %v1495, 1.442695
    %v1504 = vpow.pop %v1503
    %v1505 = vmul.f32 %v1496, 1.442695
    %v1506 = vpow.pop %v1505
    %v1507 = vmul.f32 %v1497, 1.442695
    %v1508 = vpow.pop %v1507
    %v1509 = vmul.f32 %v1498, 1.442695
    %v1510 = vpow.pop %v1509
    %v1511 = vmul.f32 %v1499, 1.442695
    %v1512 = vpow.pop %v1511
    %v1513 = vmul.f32 %v1500, 1.442695
    %v1514 = vpow.pop %v1513
    %v1515 = vmul.f32 %v1501, 1.442695
    %v1516 = vpow.pop %v1515
    %v1517 = vmul.f32 %v1502, 1.442695
    %v1518 = vpow.pop %v1517
    %v1519 = vsel %vm270, %v1504, 0.0
    %1520 = vadd.xlane.f32.xlu0 %v1519
    %v1521 = vpop.xlane.xlu0 %1520
    %v1522 = vsel %vm270, %v1506, 0.0
    %1523 = vadd.xlane.f32.xlu0 %v1522
    %v1524 = vpop.xlane.xlu0 %1523
    %v1525 = vsel %vm270, %v1508, 0.0
    %1526 = vadd.xlane.f32.xlu0 %v1525
    %v1527 = vpop.xlane.xlu0 %1526
    %v1528 = vsel %vm270, %v1510, 0.0
    %1529 = vadd.xlane.f32.xlu0 %v1528
    %v1530 = vpop.xlane.xlu0 %1529
    %v1531 = vsel %vm270, %v1512, 0.0
    %1532 = vadd.xlane.f32.xlu0 %v1531
    %v1533 = vpop.xlane.xlu0 %1532
    %v1534 = vsel %vm270, %v1514, 0.0
    %1535 = vadd.xlane.f32.xlu0 %v1534
    %v1536 = vpop.xlane.xlu0 %1535
    %v1537 = vsel %vm270, %v1516, 0.0
    %1538 = vadd.xlane.f32.xlu0 %v1537
    %v1539 = vpop.xlane.xlu0 %1538
    %v1540 = vsel %vm270, %v1518, 0.0
    %1541 = vadd.xlane.f32.xlu0 %v1540
    %v1542 = vpop.xlane.xlu0 %1541
    %v1543 = vrcp.pop %v1521
    %v1544 = vrcp.pop %v1524
    %v1545 = vrcp.pop %v1527
    %v1546 = vrcp.pop %v1530
    %v1547 = vrcp.pop %v1533
    %v1548 = vrcp.pop %v1536
    %v1549 = vrcp.pop %v1539
    %v1550 = vrcp.pop %v1542
    %v1551 = vmul.f32 %v1504, %v1543
    %v1552 = vmul.f32 %v1506, %v1544
    %v1553 = vmul.f32 %v1508, %v1545
    %v1554 = vmul.f32 %v1510, %v1546
    %v1555 = vmul.f32 %v1512, %v1547
    %v1556 = vmul.f32 %v1514, %v1548
    %v1557 = vmul.f32 %v1516, %v1549
    %v1558 = vmul.f32 %v1518, %v1550
    %v1560 = vsel %vm270, %v1551, 0
    %1562 = vmatpush.msra.mxu0 0.0
    %1563 = vmatpush.msra.mxu0 0.0
    %1564 = vmatpush.msra.mxu0 0.0
    %1565 = vmatpush.msra.mxu0 0.0
    %1566 = vmatpush.msra.mxu0 0.0
    %1567 = vmatpush.msra.mxu0 0.0
    %1568 = vmatpush.msra.mxu0 0.0
    %1569 = vmatpush.msra.mxu0 0.0
    %1570 = vmatpush.msra.mxu0 0.0
    %1571 = vmatpush.msra.mxu0 0.0
    %1572 = vmatpush.msra.mxu0 0.0
    %1573 = vmatpush.msra.mxu0 0.0
    %1574 = vmatpush.msra.mxu0 0.0
    %1575 = vmatpush.msra.mxu0 0.0
    %1576 = vmatpush.msra.mxu0 0.0
    %1577 = vmatpush.msra.mxu0 %v1226
    %1578 = vmatmul.f32.gmra.mxu0 %v1560
    %v1579 = vpop.f32.mrf.mxu0
    %v1580 = vadd.f32 0.0, %v1579
    %1581 = vdwg.mxu0
    %v1583 = vsel %vm270, %v1552, 0
    %1585 = vmatpush.msra.mxu0 0.0
    %1586 = vmatpush.msra.mxu0 0.0
    %1587 = vmatpush.msra.mxu0 0.0
    %1588 = vmatpush.msra.mxu0 0.0
    %1589 = vmatpush.msra.mxu0 0.0
    %1590 = vmatpush.msra.mxu0 0.0
    %1591 = vmatpush.msra.mxu0 0.0
    %1592 = vmatpush.msra.mxu0 0.0
    %1593 = vmatpush.msra.mxu0 0.0
    %1594 = vmatpush.msra.mxu0 0.0
    %1595 = vmatpush.msra.mxu0 0.0
    %1596 = vmatpush.msra.mxu0 0.0
    %1597 = vmatpush.msra.mxu0 0.0
    %1598 = vmatpush.msra.mxu0 0.0
    %1599 = vmatpush.msra.mxu0 0.0
    %1600 = vmatpush.msra.mxu0 %v1229
    %1601 = vmatmul.f32.gmra.mxu0 %v1583
    %v1602 = vpop.f32.mrf.mxu0
    %v1603 = vadd.f32 0.0, %v1602
    %1604 = vdwg.mxu0
    %v1606 = vsel %vm270, %v1553, 0
    %1608 = vmatpush.msra.mxu0 0.0
    %1609 = vmatpush.msra.mxu0 0.0
    %1610 = vmatpush.msra.mxu0 0.0
    %1611 = vmatpush.msra.mxu0 0.0
    %1612 = vmatpush.msra.mxu0 0.0
    %1613 = vmatpush.msra.mxu0 0.0
    %1614 = vmatpush.msra.mxu0 0.0
    %1615 = vmatpush.msra.mxu0 0.0
    %1616 = vmatpush.msra.mxu0 0.0
    %1617 = vmatpush.msra.mxu0 0.0
    %1618 = vmatpush.msra.mxu0 0.0
    %1619 = vmatpush.msra.mxu0 0.0
    %1620 = vmatpush.msra.mxu0 0.0
    %1621 = vmatpush.msra.mxu0 0.0
    %1622 = vmatpush.msra.mxu0 0.0
    %1623 = vmatpush.msra.mxu0 %v1262
    %1624 = vmatmul.f32.gmra.mxu0 %v1606
    %v1625 = vpop.f32.mrf.mxu0
    %v1626 = vadd.f32 0.0, %v1625
    %1627 = vdwg.mxu0
    %v1629 = vsel %vm270, %v1554, 0
    %1631 = vmatpush.msra.mxu0 0.0
    %1632 = vmatpush.msra.mxu0 0.0
    %1633 = vmatpush.msra.mxu0 0.0
    %1634 = vmatpush.msra.mxu0 0.0
    %1635 = vmatpush.msra.mxu0 0.0
    %1636 = vmatpush.msra.mxu0 0.0
    %1637 = vmatpush.msra.mxu0 0.0
    %1638 = vmatpush.msra.mxu0 0.0
    %1639 = vmatpush.msra.mxu0 0.0
    %1640 = vmatpush.msra.mxu0 0.0
    %1641 = vmatpush.msra.mxu0 0.0
    %1642 = vmatpush.msra.mxu0 0.0
    %1643 = vmatpush.msra.mxu0 0.0
    %1644 = vmatpush.msra.mxu0 0.0
    %1645 = vmatpush.msra.mxu0 0.0
    %1646 = vmatpush.msra.mxu0 %v1264
    %1647 = vmatmul.f32.gmra.mxu0 %v1629
    %v1648 = vpop.f32.mrf.mxu0
    %v1649 = vadd.f32 0.0, %v1648
    %1650 = vdwg.mxu0
    %v1652 = vsel %vm270, %v1555, 0
    %1654 = vmatpush.msra.mxu0 0.0
    %1655 = vmatpush.msra.mxu0 0.0
    %1656 = vmatpush.msra.mxu0 0.0
    %1657 = vmatpush.msra.mxu0 0.0
    %1658 = vmatpush.msra.mxu0 0.0
    %1659 = vmatpush.msra.mxu0 0.0
    %1660 = vmatpush.msra.mxu0 0.0
    %1661 = vmatpush.msra.mxu0 0.0
    %1662 = vmatpush.msra.mxu0 0.0
    %1663 = vmatpush.msra.mxu0 0.0
    %1664 = vmatpush.msra.mxu0 0.0
    %1665 = vmatpush.msra.mxu0 0.0
    %1666 = vmatpush.msra.mxu0 0.0
    %1667 = vmatpush.msra.mxu0 0.0
    %1668 = vmatpush.msra.mxu0 0.0
    %1669 = vmatpush.msra.mxu0 %v1268
    %1670 = vmatmul.f32.gmra.mxu0 %v1652
    %v1671 = vpop.f32.mrf.mxu0
    %v1672 = vadd.f32 0.0, %v1671
    %1673 = vdwg.mxu0
    %v1675 = vsel %vm270, %v1556, 0
    %1677 = vmatpush.msra.mxu0 0.0
    %1678 = vmatpush.msra.mxu0 0.0
    %1679 = vmatpush.msra.mxu0 0.0
    %1680 = vmatpush.msra.mxu0 0.0
    %1681 = vmatpush.msra.mxu0 0.0
    %1682 = vmatpush.msra.mxu0 0.0
    %1683 = vmatpush.msra.mxu0 0.0
    %1684 = vmatpush.msra.mxu0 0.0
    %1685 = vmatpush.msra.mxu0 0.0
    %1686 = vmatpush.msra.mxu0 0.0
    %1687 = vmatpush.msra.mxu0 0.0
    %1688 = vmatpush.msra.mxu0 0.0
    %1689 = vmatpush.msra.mxu0 0.0
    %1690 = vmatpush.msra.mxu0 0.0
    %1691 = vmatpush.msra.mxu0 0.0
    %1692 = vmatpush.msra.mxu0 %v1270
    %1693 = vmatmul.f32.gmra.mxu0 %v1675
    %v1694 = vpop.f32.mrf.mxu0
    %v1695 = vadd.f32 0.0, %v1694
    %1696 = vdwg.mxu0
    %v1698 = vsel %vm270, %v1557, 0
    %1700 = vmatpush.msra.mxu0 0.0
    %1701 = vmatpush.msra.mxu0 0.0
    %1702 = vmatpush.msra.mxu0 0.0
    %1703 = vmatpush.msra.mxu0 0.0
    %1704 = vmatpush.msra.mxu0 0.0
    %1705 = vmatpush.msra.mxu0 0.0
    %1706 = vmatpush.msra.mxu0 0.0
    %1707 = vmatpush.msra.mxu0 0.0
    %1708 = vmatpush.msra.mxu0 0.0
    %1709 = vmatpush.msra.mxu0 0.0
    %1710 = vmatpush.msra.mxu0 0.0
    %1711 = vmatpush.msra.mxu0 0.0
    %1712 = vmatpush.msra.mxu0 0.0
    %1713 = vmatpush.msra.mxu0 0.0
    %1714 = vmatpush.msra.mxu0 0.0
    %1715 = vmatpush.msra.mxu0 %v1274
    %1716 = vmatmul.f32.gmra.mxu0 %v1698
    %v1717 = vpop.f32.mrf.mxu0
    %v1718 = vadd.f32 0.0, %v1717
    %1719 = vdwg.mxu0
    %v1721 = vsel %vm270, %v1558, 0
    %1723 = vmatpush.msra.mxu0 0.0
    %1724 = vmatpush.msra.mxu0 0.0
    %1725 = vmatpush.msra.mxu0 0.0
    %1726 = vmatpush.msra.mxu0 0.0
    %1727 = vmatpush.msra.mxu0 0.0
    %1728 = vmatpush.msra.mxu0 0.0
    %1729 = vmatpush.msra.mxu0 0.0
    %1730 = vmatpush.msra.mxu0 0.0
    %1731 = vmatpush.msra.mxu0 0.0
    %1732 = vmatpush.msra.mxu0 0.0
    %1733 = vmatpush.msra.mxu0 0.0
    %1734 = vmatpush.msra.mxu0 0.0
    %1735 = vmatpush.msra.mxu0 0.0
    %1736 = vmatpush.msra.mxu0 0.0
    %1737 = vmatpush.msra.mxu0 0.0
    %1738 = vmatpush.msra.mxu0 %v1276
    %1739 = vmatmul.f32.gmra.mxu0 %v1721
    %v1740 = vpop.f32.mrf.mxu0
    %v1741 = vadd.f32 0.0, %v1740
    %1742 = vdwg.mxu0
    %s1743 = scalar_lea.vmem [#allocation7], 32
    %v1744 = vld [vmem:[%s1743] sm:$0xff]
    %v1745 = vld [vmem:[%s1743 + $0x8] sm:$0xff]
    %v1746 = vld [vmem:[%s1743 + $0x10] sm:$0xff]
    %v1747 = vld [vmem:[%s1743 + $0x18] sm:$0xff]
    %v1749 = vsel %vm270, %v1580, 0
    %v1752 = vsel %vm270, %v1603, 0
    %1754 = vmatpush.msra.mxu0 0.0
    %1755 = vmatpush.msra.mxu0 0.0
    %1756 = vmatpush.msra.mxu0 0.0
    %1757 = vmatpush.msra.mxu0 0.0
    %1758 = vmatpush.msra.mxu0 0.0
    %1759 = vmatpush.msra.mxu0 0.0
    %1760 = vmatpush.msra.mxu0 0.0
    %1761 = vmatpush.msra.mxu0 0.0
    %1762 = vmatpush.msra.mxu0 0.0
    %1763 = vmatpush.msra.mxu0 0.0
    %1764 = vmatpush.msra.mxu0 0.0
    %1765 = vmatpush.msra.mxu0 0.0
    %1766 = vmatpush.msra.mxu0 0.0
    %1767 = vmatpush.msra.mxu0 0.0
    %1768 = vmatpush.msra.mxu0 0.0
    %1769 = vmatpush.msra.mxu0 %v1744
    %1770 = vmatmul.f32.gmra.mxu0 %v1749
    %v1771 = vpop.f32.mrf.mxu0
    %v1772 = vadd.f32 0.0, %v1771
    %1773 = vmatmul.f32.gmra.mxu0 %v1752
    %v1774 = vpop.f32.mrf.mxu0
    %v1775 = vadd.f32 0.0, %v1774
    %1776 = vdwg.mxu0
    %v1778 = vsel %vm270, %v1626, 0
    %v1781 = vsel %vm270, %v1649, 0
    %1783 = vmatpush.msra.mxu0 0.0
    %1784 = vmatpush.msra.mxu0 0.0
    %1785 = vmatpush.msra.mxu0 0.0
    %1786 = vmatpush.msra.mxu0 0.0
    %1787 = vmatpush.msra.mxu0 0.0
    %1788 = vmatpush.msra.mxu0 0.0
    %1789 = vmatpush.msra.mxu0 0.0
    %1790 = vmatpush.msra.mxu0 0.0
    %1791 = vmatpush.msra.mxu0 0.0
    %1792 = vmatpush.msra.mxu0 0.0
    %1793 = vmatpush.msra.mxu0 0.0
    %1794 = vmatpush.msra.mxu0 0.0
    %1795 = vmatpush.msra.mxu0 0.0
    %1796 = vmatpush.msra.mxu0 0.0
    %1797 = vmatpush.msra.mxu0 0.0
    %1798 = vmatpush.msra.mxu0 %v1745
    %1799 = vmatmul.f32.gmra.mxu0 %v1778
    %v1800 = vpop.f32.mrf.mxu0
    %v1801 = vadd.f32 0.0, %v1800
    %1802 = vmatmul.f32.gmra.mxu0 %v1781
    %v1803 = vpop.f32.mrf.mxu0
    %v1804 = vadd.f32 0.0, %v1803
    %1805 = vdwg.mxu0
    %v1807 = vsel %vm270, %v1672, 0
    %v1810 = vsel %vm270, %v1695, 0
    %1812 = vmatpush.msra.mxu0 0.0
    %1813 = vmatpush.msra.mxu0 0.0
    %1814 = vmatpush.msra.mxu0 0.0
    %1815 = vmatpush.msra.mxu0 0.0
    %1816 = vmatpush.msra.mxu0 0.0
    %1817 = vmatpush.msra.mxu0 0.0
    %1818 = vmatpush.msra.mxu0 0.0
    %1819 = vmatpush.msra.mxu0 0.0
    %1820 = vmatpush.msra.mxu0 0.0
    %1821 = vmatpush.msra.mxu0 0.0
    %1822 = vmatpush.msra.mxu0 0.0
    %1823 = vmatpush.msra.mxu0 0.0
    %1824 = vmatpush.msra.mxu0 0.0
    %1825 = vmatpush.msra.mxu0 0.0
    %1826 = vmatpush.msra.mxu0 0.0
    %1827 = vmatpush.msra.mxu0 %v1746
    %1828 = vmatmul.f32.gmra.mxu0 %v1807
    %v1829 = vpop.f32.mrf.mxu0
    %v1830 = vadd.f32 0.0, %v1829
    %1831 = vmatmul.f32.gmra.mxu0 %v1810
    %v1832 = vpop.f32.mrf.mxu0
    %v1833 = vadd.f32 0.0, %v1832
    %1834 = vdwg.mxu0
    %v1836 = vsel %vm270, %v1718, 0
    %v1839 = vsel %vm270, %v1741, 0
    %1841 = vmatpush.msra.mxu0 0.0
    %1842 = vmatpush.msra.mxu0 0.0
    %1843 = vmatpush.msra.mxu0 0.0
    %1844 = vmatpush.msra.mxu0 0.0
    %1845 = vmatpush.msra.mxu0 0.0
    %1846 = vmatpush.msra.mxu0 0.0
    %1847 = vmatpush.msra.mxu0 0.0
    %1848 = vmatpush.msra.mxu0 0.0
    %1849 = vmatpush.msra.mxu0 0.0
    %1850 = vmatpush.msra.mxu0 0.0
    %1851 = vmatpush.msra.mxu0 0.0
    %1852 = vmatpush.msra.mxu0 0.0
    %1853 = vmatpush.msra.mxu0 0.0
    %1854 = vmatpush.msra.mxu0 0.0
    %1855 = vmatpush.msra.mxu0 0.0
    %1856 = vmatpush.msra.mxu0 %v1747
    %1857 = vmatmul.f32.gmra.mxu0 %v1836
    %v1858 = vpop.f32.mrf.mxu0
    %v1859 = vadd.f32 0.0, %v1858
    %1860 = vmatmul.f32.gmra.mxu0 %v1839
    %v1861 = vpop.f32.mrf.mxu0
    %v1862 = vadd.f32 0.0, %v1861
    %1863 = vdwg.mxu0
    %v1864 = vsel %vm136, %v1772, 0.0
    %v1865 = vsel %vm136, %v1801, 0.0
    %v1866 = vadd.f32 %v1864, %v1865
    %v1867 = vsel %vm136, %v1830, 0.0
    %v1868 = vadd.f32 %v1866, %v1867
    %v1869 = vsel %vm136, %v1859, 0.0
    %v1870 = vadd.f32 %v1868, %v1869
    %v1871 = vsel %vm136, %v1775, 0.0
    %v1872 = vsel %vm136, %v1804, 0.0
    %v1873 = vadd.f32 %v1871, %v1872
    %v1874 = vsel %vm136, %v1833, 0.0
    %v1875 = vadd.f32 %v1873, %v1874
    %v1876 = vsel %vm136, %v1862, 0.0
    %v1877 = vadd.f32 %v1875, %v1876
    %v1878 = vadd.f32 %v1135, %v1870
    %v1879 = vadd.f32 %v1136, %v1877
    %s1880 = scalar_lea.vmem %s6, 1
    %v1881 = vld [vmem:[%s1880] sm:$0x1]
    %s1882 = scalar_lea.vmem %s7, 1
    %v1883 = vld [vmem:[%s1882] sm:$0x1]
    %v1884 = vsel %vm136, %v1878, 0.0
    %1885 = vadd.xlane.f32.xlu0 %v1884
    %v1886 = vpop.xlane.xlu0 %1885
    %v1887 = vsel %vm136, %v1879, 0.0
    %1888 = vadd.xlane.f32.xlu0 %v1887
    %v1889 = vpop.xlane.xlu0 %1888
    %v1890 = vmul.f32 %v1886, %v885
    %v1891 = vmul.f32 %v1889, %v885
    %v1892 = vsub.f32 %v1878, %v1890
    %v1893 = vsub.f32 %v1879, %v1891
    %v1894 = vmul.f32 %v1892, %v1892
    %v1895 = vmul.f32 %v1893, %v1893
    %v1896 = vsel %vm136, %v1894, 0.0
    %1897 = vadd.xlane.f32.xlu0 %v1896
    %v1898 = vpop.xlane.xlu0 %1897
    %v1899 = vsel %vm136, %v1895, 0.0
    %1900 = vadd.xlane.f32.xlu0 %v1899
    %v1901 = vpop.xlane.xlu0 %1900
    %v1902 = vmul.f32 %v1898, 0.032258064
    %v1903 = vmul.f32 %v1901, 0.032258064
    %v1904 = vrsqrt.pop %v1902
    %v1905 = vmul.f32 %v1904, %v1902
    %v1906 = vmul.f32 %v1905, %v1904
    %v1907 = vmul.f32 0.5, %v1906
    %v1908 = vsub.f32 1.5, %v1907
    %v1909 = vmul.f32 %v1904, %v1908
    %v1910 = vmul.f32 %v1902, %v1909
    %vm1911 = vcmp.eq.f32.partialorder %v1902, inf
    %v1912 = vsel %vm1911, %v1902, %v1910
    %vm1913 = vcmp.eq.f32.partialorder %v1902, 0.0
    %v1914 = vand.u32 %v1902, 2147483648
    %v1915 = vsel %vm1913, %v1914, %v1912
    %v1916 = vrsqrt.pop %v1903
    %v1917 = vmul.f32 %v1916, %v1903
    %v1918 = vmul.f32 %v1917, %v1916
    %v1919 = vmul.f32 0.5, %v1918
    %v1920 = vsub.f32 1.5, %v1919
    %v1921 = vmul.f32 %v1916, %v1920
    %v1922 = vmul.f32 %v1903, %v1921
    %vm1923 = vcmp.eq.f32.partialorder %v1903, inf
    %v1924 = vsel %vm1923, %v1903, %v1922
    %vm1925 = vcmp.eq.f32.partialorder %v1903, 0.0
    %v1926 = vand.u32 %v1903, 2147483648
    %v1927 = vsel %vm1925, %v1926, %v1924
    %v1928 = vadd.f32 %v1915, 1e-06
    %v1929 = vadd.f32 %v1927, 1e-06
    %v1930 = vrcp.pop %v1928
    %v1931 = vmul.f32 %v1928, %v1930
    %v1932 = vsub.f32 1.0, %v1931
    %v1933 = vmul.f32 %v1930, %v1932
    %v1934 = vadd.f32 %v1930, %v1933
    %vm1935 = vweird.f32 %v1928
    %vm1936 = vweird.f32 %v1930
    %vm1937 = vmor %vm1935, %vm1936
    %v1938 = vsel %vm1937, %v1930, %v1934
    %v1939 = vand.u32 2147483647, %v1928
    %vm1940 = vcmp.eq.f32.partialorder %v1939, 8.507059e+37
    %v1941 = vand.u32 %v1928, 2147483648
    %v1942 = vor.u32 1.1754944e-38, %v1941
    %v1943 = vsel %vm1940, %v1942, %v1938
    %v1944 = vrcp.pop %v1929
    %v1945 = vmul.f32 %v1929, %v1944
    %v1946 = vsub.f32 1.0, %v1945
    %v1947 = vmul.f32 %v1944, %v1946
    %v1948 = vadd.f32 %v1944, %v1947
    %vm1949 = vweird.f32 %v1929
    %vm1950 = vweird.f32 %v1944
    %vm1951 = vmor %vm1949, %vm1950
    %v1952 = vsel %vm1951, %v1944, %v1948
    %v1953 = vand.u32 2147483647, %v1929
    %vm1954 = vcmp.eq.f32.partialorder %v1953, 8.507059e+37
    %v1955 = vand.u32 %v1929, 2147483648
    %v1956 = vor.u32 1.1754944e-38, %v1955
    %v1957 = vsel %vm1954, %v1956, %v1952
    %v1959 = vperm.slane %v1881, 0
    %v1961 = vmul.f32 %v1959, %v1892
    %v1962 = vmul.f32 %v1959, %v1893
    %v1963 = vmul.f32 %v1961, %v1943
    %v1964 = vmul.f32 %v1962, %v1957
    %v1966 = vperm.slane %v1883, 0
    %v1968 = vadd.f32 %v1963, %v1966
    %v1969 = vadd.f32 %v1964, %v1966
    %s1970 = scalar_lea.vmem [#allocation8], 32
    %v1971 = vld [vmem:[%s1970] sm:$0xff]
    %v1972 = vld [vmem:[%s1970 + $0x8] sm:$0xff]
    %v1973 = vld [vmem:[%s1970 + $0x10] sm:$0xff]
    %v1974 = vld [vmem:[%s1970 + $0x18] sm:$0xff]
    %s1975 = scalar_lea.vmem %s9, 1
    %v1976 = vld [vmem:[%s1975] sm:$0x1]
    %v1978 = vperm.slane %v1976, 0
    %v1981 = vsel %vm136, %v1968, 0
    %v1984 = vsel %vm136, %v1969, 0
    %1986 = vmatpush.msra.mxu0 0.0
    %1987 = vmatpush.msra.mxu0 0.0
    %1988 = vmatpush.msra.mxu0 0.0
    %1989 = vmatpush.msra.mxu0 0.0
    %1990 = vmatpush.msra.mxu0 0.0
    %1991 = vmatpush.msra.mxu0 0.0
    %1992 = vmatpush.msra.mxu0 0.0
    %1993 = vmatpush.msra.mxu0 0.0
    %1994 = vmatpush.msra.mxu0 0.0
    %1995 = vmatpush.msra.mxu0 0.0
    %1996 = vmatpush.msra.mxu0 0.0
    %1997 = vmatpush.msra.mxu0 0.0
    %1998 = vmatpush.msra.mxu0 %v1974
    %1999 = vmatpush.msra.mxu0 %v1973
    %2000 = vmatpush.msra.mxu0 %v1972
    %2001 = vmatpush.msra.mxu0 %v1971
    %2002 = vmatmul.f32.gmra.mxu0 %v1981
    %v2003 = vpop.f32.mrf.mxu0
    %v2004 = vadd.f32 %v1978, %v2003
    %2005 = vmatmul.f32.gmra.mxu0 %v1984
    %v2006 = vpop.f32.mrf.mxu0
    %v2007 = vadd.f32 %v1978, %v2006
    %2008 = vdwg.mxu0
    %v2009 = vmax.f32 %v2004, 0.0
    %v2010 = vmax.f32 %v2007, 0.0
    %s2011 = scalar_lea.vmem %s10, 64
    %v2012 = vld [vmem:[%s2011] sm:$0xff]
    %v2013 = vld [vmem:[%s2011 + $0x8] sm:$0xff]
    %v2014 = vld [vmem:[%s2011 + $0x10] sm:$0xff]
    %v2015 = vld [vmem:[%s2011 + $0x18] sm:$0xff]
    %v2016 = vld [vmem:[%s2011 + $0x20] sm:$0xff]
    %v2017 = vld [vmem:[%s2011 + $0x28] sm:$0xff]
    %v2018 = vld [vmem:[%s2011 + $0x30] sm:$0xff]
    %v2019 = vld [vmem:[%s2011 + $0x38] sm:$0xff]
    %s2020 = scalar_lea.vmem %s11, 1
    %v2021 = vld [vmem:[%s2020] sm:$0x1]
    %v2023 = vperm.slane %v2021, 0
    %v2026 = vsel %vm1017, %v2009, 0
    %v2029 = vsel %vm1017, %v2010, 0
    %2031 = vmatpush.msra.mxu0 0.0
    %2032 = vmatpush.msra.mxu0 0.0
    %2033 = vmatpush.msra.mxu0 0.0
    %2034 = vmatpush.msra.mxu0 0.0
    %2035 = vmatpush.msra.mxu0 0.0
    %2036 = vmatpush.msra.mxu0 0.0
    %2037 = vmatpush.msra.mxu0 0.0
    %2038 = vmatpush.msra.mxu0 0.0
    %2039 = vmatpush.msra.mxu0 %v2019
    %2040 = vmatpush.msra.mxu0 %v2018
    %2041 = vmatpush.msra.mxu0 %v2017
    %2042 = vmatpush.msra.mxu0 %v2016
    %2043 = vmatpush.msra.mxu0 %v2015
    %2044 = vmatpush.msra.mxu0 %v2014
    %2045 = vmatpush.msra.mxu0 %v2013
    %2046 = vmatpush.msra.mxu0 %v2012
    %2047 = vmatmul.f32.gmra.mxu0 %v2026
    %v2048 = vpop.f32.mrf.mxu0
    %v2049 = vadd.f32 %v2023, %v2048
    %2050 = vmatmul.f32.gmra.mxu0 %v2029
    %v2051 = vpop.f32.mrf.mxu0
    %v2052 = vadd.f32 %v2023, %v2051
    %2053 = vdwg.mxu0
    %v2054 = vadd.f32 %v1968, %v2049
    %v2055 = vadd.f32 %v1969, %v2052
    %s2056 = scalar_lea.vmem %s12, 1
    %v2057 = vld [vmem:[%s2056] sm:$0x1]
    %s2058 = scalar_lea.vmem [#allocation10], 1
    %v2059 = vld [vmem:[%s2058] sm:$0x1]
    %v2060 = vsel %vm136, %v2054, 0.0
    %2061 = vadd.xlane.f32.xlu0 %v2060
    %v2062 = vpop.xlane.xlu0 %2061
    %v2063 = vsel %vm136, %v2055, 0.0
    %2064 = vadd.xlane.f32.xlu0 %v2063
    %v2065 = vpop.xlane.xlu0 %2064
    %v2066 = vmul.f32 %v2062, %v885
    %v2067 = vmul.f32 %v2065, %v885
    %v2068 = vsub.f32 %v2054, %v2066
    %v2069 = vsub.f32 %v2055, %v2067
    %v2070 = vmul.f32 %v2068, %v2068
    %v2071 = vmul.f32 %v2069, %v2069
    %v2072 = vsel %vm136, %v2070, 0.0
    %2073 = vadd.xlane.f32.xlu0 %v2072
    %v2074 = vpop.xlane.xlu0 %2073
    %v2075 = vsel %vm136, %v2071, 0.0
    %2076 = vadd.xlane.f32.xlu0 %v2075
    %v2077 = vpop.xlane.xlu0 %2076
    %v2078 = vmul.f32 %v2074, 0.032258064
    %v2079 = vmul.f32 %v2077, 0.032258064
    %v2080 = vrsqrt.pop %v2078
    %v2081 = vmul.f32 %v2080, %v2078
    %v2082 = vmul.f32 %v2081, %v2080
    %v2083 = vmul.f32 0.5, %v2082
    %v2084 = vsub.f32 1.5, %v2083
    %v2085 = vmul.f32 %v2080, %v2084
    %v2086 = vmul.f32 %v2078, %v2085
    %vm2087 = vcmp.eq.f32.partialorder %v2078, inf
    %v2088 = vsel %vm2087, %v2078, %v2086
    %vm2089 = vcmp.eq.f32.partialorder %v2078, 0.0
    %v2090 = vand.u32 %v2078, 2147483648
    %v2091 = vsel %vm2089, %v2090, %v2088
    %v2092 = vrsqrt.pop %v2079
    %v2093 = vmul.f32 %v2092, %v2079
    %v2094 = vmul.f32 %v2093, %v2092
    %v2095 = vmul.f32 0.5, %v2094
    %v2096 = vsub.f32 1.5, %v2095
    %v2097 = vmul.f32 %v2092, %v2096
    %v2098 = vmul.f32 %v2079, %v2097
    %vm2099 = vcmp.eq.f32.partialorder %v2079, inf
    %v2100 = vsel %vm2099, %v2079, %v2098
    %vm2101 = vcmp.eq.f32.partialorder %v2079, 0.0
    %v2102 = vand.u32 %v2079, 2147483648
    %v2103 = vsel %vm2101, %v2102, %v2100
    %v2104 = vadd.f32 %v2091, 1e-06
    %v2105 = vadd.f32 %v2103, 1e-06
    %v2106 = vrcp.pop %v2104
    %v2107 = vmul.f32 %v2104, %v2106
    %v2108 = vsub.f32 1.0, %v2107
    %v2109 = vmul.f32 %v2106, %v2108
    %v2110 = vadd.f32 %v2106, %v2109
    %vm2111 = vweird.f32 %v2104
    %vm2112 = vweird.f32 %v2106
    %vm2113 = vmor %vm2111, %vm2112
    %v2114 = vsel %vm2113, %v2106, %v2110
    %v2115 = vand.u32 2147483647, %v2104
    %vm2116 = vcmp.eq.f32.partialorder %v2115, 8.507059e+37
    %v2117 = vand.u32 %v2104, 2147483648
    %v2118 = vor.u32 1.1754944e-38, %v2117
    %v2119 = vsel %vm2116, %v2118, %v2114
    %v2120 = vrcp.pop %v2105
    %v2121 = vmul.f32 %v2105, %v2120
    %v2122 = vsub.f32 1.0, %v2121
    %v2123 = vmul.f32 %v2120, %v2122
    %v2124 = vadd.f32 %v2120, %v2123
    %vm2125 = vweird.f32 %v2105
    %vm2126 = vweird.f32 %v2120
    %vm2127 = vmor %vm2125, %vm2126
    %v2128 = vsel %vm2127, %v2120, %v2124
    %v2129 = vand.u32 2147483647, %v2105
    %vm2130 = vcmp.eq.f32.partialorder %v2129, 8.507059e+37
    %v2131 = vand.u32 %v2105, 2147483648
    %v2132 = vor.u32 1.1754944e-38, %v2131
    %v2133 = vsel %vm2130, %v2132, %v2128
    %v2135 = vperm.slane %v2057, 0
    %v2137 = vmul.f32 %v2135, %v2068
    %v2138 = vmul.f32 %v2135, %v2069
    %v2139 = vmul.f32 %v2137, %v2119
    %v2140 = vmul.f32 %v2138, %v2133
    %v2142 = vperm.slane %v2059, 0
    %v2144 = vadd.f32 %v2139, %v2142
    %v2145 = vadd.f32 %v2140, %v2142
    %s2146 = scalar_lea.vmem [#allocation11], 16
    %2147 = vst.msk [vmem:[%s2146] sm:$0xff] %vm136, %v2144
    %2148 = vst.msk [vmem:[%s2146 + $0x8] sm:$0xff] %vm136, %v2145
    // Predicated region
    $region78: #{tpu_custom_call.1} parent=1 // pred_check
      _
    $region79: #{tpu_custom_call.1} parent=1 // pred_check_branch
      %2150 = sbr.rel (0) target = $region81
    $region80: #{tpu_custom_call.1} parent=1 // pred_region
      %2152 = vsyncadd [#allocation4], 0
      %s2153 = sshll.u32 [#allocation11], 4
      %s2154 = int_to_ptr.vmem [resolvable:$true] %s2153
      %s2155 = sshll.u32 %s14, 4
      %s2156 = int_to_ptr.hbm [resolvable:$true] %s2155
      %2161 = dma.vmem_to_hbm [thread:$0]  %s2154, 512, %s2156, [#allocation4], 128, 128, 8
    $region81: #{tpu_custom_call.1} parent=1 // pred_fallthru
      _
    // Predicated region
    $region82: #{tpu_custom_call.1} parent=1 // pred_check
      _
    $region83: #{tpu_custom_call.1} parent=1 // pred_check_branch
      %2163 = sbr.rel (0) target = $region85
    $region84: #{tpu_custom_call.1} parent=1 // pred_region
      %2165 = dma.done [#allocation4], 512
    $region85: #{tpu_custom_call.1} parent=1 // pred_fallthru
      _
    %2166 = vsyncpa [#allocation3], 1
    %2167 = vsyncpa [#allocation6], 1
    %2168 = vsyncpa [#allocation9], 1
    %2169 = vsyncpa [#allocation4], 1

</llo_original>
